<compile_context>
chip_gen: v7x
topology: tpu7x:2x2x1
jax: 0.10.0
libtpu: 0.0.40
codegen_flags: <defaults>
</compile_context>

<pallas_src>
import functools

import jax
import jax.numpy as jnp
from jax import lax
from jax.experimental import pallas as pl
from jax.experimental.pallas import tpu as pltpu


def _round_up(x: int, m: int) -> int:
    return (x + m - 1) // m * m


def _avg_embed_kernel(ids_ref, lens_ref, emb_ref, out_ref, acc_ref, *, vc: int):
    # ids_ref : VMEM (TB, S)  int32    word ids of this sentence tile
    # lens_ref: VMEM (TB, 1)  int32    per-sentence true lengths
    # emb_ref : VMEM (VT, D)  f32/bf16 one vocab-row tile of the embedding table
    # out_ref : VMEM (TB, D)  float32  per-sentence mean embeddings
    # acc_ref : VMEM (TB, D)  float32  running sums across vocab tiles (grid axis 1)
    j = pl.program_id(1)
    tb, d = out_ref.shape
    s_len = ids_ref.shape[1]
    vt = emb_ref.shape[0]
    n_chunks = vt // vc

    @pl.when(j == 0)
    def _():
        acc_ref[...] = jnp.zeros_like(acc_ref)

    ids = ids_ref[...]                                        # (TB, S) int32
    lens = lens_ref[...]                                      # (TB, 1) int32
    pos = lax.broadcasted_iota(jnp.int32, (tb, s_len), 1)
    ids_m = jnp.where(pos < lens, ids, -1)                    # padded tokens never match

    cast_counts = jnp.dtype(emb_ref.dtype) == jnp.dtype(jnp.bfloat16)

    def chunk(c, acc):
        # counts[b, t] = #{valid s : ids[b, s] == vbase + t}  for this vocab chunk.
        vbase = j * vt + c * vc
        lane_ids = vbase + lax.broadcasted_iota(jnp.int32, (1, vc), 1)   # (1, VC)
        counts = (ids_m[:, 0:1] == lane_ids).astype(jnp.float32)         # (TB, VC)
        for s in range(1, s_len):                                        # S is small & static
            counts = counts + (ids_m[:, s:s + 1] == lane_ids).astype(jnp.float32)
        start = pl.multiple_of(c * vc, vc)
        tile = emb_ref[pl.ds(start, vc), :]                              # (VC, D)
        lhs = counts.astype(emb_ref.dtype) if cast_counts else counts    # counts <= S: exact
        return acc + jnp.dot(lhs, tile, preferred_element_type=jnp.float32)

    acc = lax.fori_loop(0, n_chunks, chunk,
                        jnp.zeros((tb, d), jnp.float32),
                        unroll=(n_chunks <= 8))
    acc_ref[...] += acc                                        # one VMEM RMW per grid step

    @pl.when(j == pl.num_programs(1) - 1)
    def _():
        lenf = jnp.maximum(lens, 1).astype(jnp.float32)        # (TB, 1)
        out_ref[...] = (acc_ref[...] / lenf).astype(out_ref.dtype)


def word_embedding_average(word_ids: jax.Array, lens: jax.Array, emb_table: jax.Array,
                           *, tb: int = 128, vc: int = 256,
                           max_resident_bytes: int | None = None) -> jax.Array:
    """Embedding gather + per-sentence mean (== mean(E[ids[b, :lens[b]]], axis=0)).

    word_ids : (B, S) int32, padded past lens[b] with any id (ignored)
    lens     : (B,)   int32, number of real tokens per sentence (>= 1)
    emb_table: (V+1, D) float32/bfloat16, row V is the UNK (mean) row
    returns  : (B, D) float32
    """
    B, S = word_ids.shape
    V1, D = emb_table.shape
    assert S >= 1
    assert D % 128 == 0, "pad the embedding dim to a multiple of 128 (lane-dense tiles)"
    assert vc % 128 == 0

    word_ids = jnp.clip(word_ids.astype(jnp.int32), 0, V1 - 1)   # OOB-safe (torch would raise)
    lens = lens.astype(jnp.int32)

    # ---- generation-aware resident-table cutoff --------------------------------
    if max_resident_bytes is None:
        try:
            vmem_bytes = pltpu.get_tpu_info().vmem_capacity_bytes
        except Exception:
            vmem_bytes = 64 * 1024 * 1024            # conservative (v7x-sized) fallback
        # table tile is double-buffered; leave room for ids / lens / out / acc.
        max_resident_bytes = vmem_bytes // 8
    esize = jnp.dtype(emb_table.dtype).itemsize
    rows_budget = max(vc, (max_resident_bytes // max(1, D * esize)) // vc * vc)
    v_res = _round_up(V1, vc)
    if v_res <= rows_budget:
        vt = v_res                    # resident: single vocab block, DMA'd once, reused forever
    else:
        vt = min(2048, rows_budget)   # streamed: pipeline (vt, D) vocab tiles through VMEM
    v_pad = _round_up(V1, vt)
    if v_pad != V1:
        emb_table = jnp.concatenate(
            [emb_table, jnp.zeros((v_pad - V1, D), emb_table.dtype)], axis=0)

    # ---- sentence tiling --------------------------------------------------------
    tb = max(8, min(tb, _round_up(B, 8)))
    b8 = _round_up(B, 8)
    if b8 // tb < 2 and b8 >= 16:
        tb = max(8, _round_up(b8 // 2, 8))   # >= 2 "parallel" tiles so v7x uses both TCs
    assert tb % 8 == 0
    b_pad = _round_up(B, tb)
    if b_pad != B:
        pad = b_pad - B
        word_ids = jnp.concatenate([word_ids, jnp.zeros((pad, S), jnp.int32)], axis=0)
        lens = jnp.concatenate([lens, jnp.ones((pad,), jnp.int32)], axis=0)
    lens2d = lens.reshape(b_pad, 1)

    b_tiles = b_pad // tb
    v_tiles = v_pad // vt
    resident = v_tiles == 1
    flops = 2 * b_pad * v_pad * D
    bytes_accessed = (v_pad * D * esize * (1 if resident else b_tiles)
                      + b_pad * (S + 1) * 4 + b_pad * D * 4)

    out = pl.pallas_call(
        functools.partial(_avg_embed_kernel, vc=vc),
        out_shape=jax.ShapeDtypeStruct((b_pad, D), jnp.float32),
        grid_spec=pltpu.PrefetchScalarGridSpec(
            num_scalar_prefetch=0,
            grid=(b_tiles, v_tiles),                           # vocab = inner reduction axis
            in_specs=[
                pl.BlockSpec((tb, S), lambda i, j: (i, 0)),    # per-tile word ids
                pl.BlockSpec((tb, 1), lambda i, j: (i, 0)),    # per-tile lengths
                pl.BlockSpec((vt, D), lambda i, j: (j, 0)),    # vocab-row tile of the table
            ],
            out_specs=pl.BlockSpec((tb, D), lambda i, j: (i, 0)),
            scratch_shapes=[pltpu.VMEM((tb, D), jnp.float32)], # cross-vocab-tile accumulator
        ),
        compiler_params=pltpu.CompilerParams(
            dimension_semantics=("parallel", "arbitrary"),
        ),
        cost_estimate=pl.CostEstimate(flops=int(flops), transcendentals=0,
                                      bytes_accessed=int(bytes_accessed)),
    )(word_ids, lens2d, emb_table)
    return out[:B]


if __name__ == "__main__":
    # Deterministic synthetic "gensim" vectors (no checkpoint load).
    V, D = 1000, 128        # vocabulary size, embedding dim (multiple of 128)
    B, S = 10, 12           # batch of sentences (not a multiple of 8), max words

    key = jax.random.PRNGKey(0)
    k_w, k_ids, k_len = jax.random.split(key, 3)

    weights = jax.random.normal(k_w, (V, D), dtype=jnp.float32)
    unk_row = jnp.mean(weights, axis=0, keepdims=True)           # UNK = mean of vectors
    emb_table = jnp.concatenate([weights, unk_row], axis=0)      # (V+1, D)

    lens = jax.random.randint(k_len, (B,), 1, S + 1, dtype=jnp.int32)
    raw_ids = jax.random.randint(k_ids, (B, S), 0, V + 1, dtype=jnp.int32)
    pad_mask = jnp.arange(S)[None, :] < lens[:, None]
    word_ids = jnp.where(pad_mask, raw_ids, V).astype(jnp.int32)  # pad with UNK id

    # Pure-JAX reference: per-sentence mean over the real tokens only.
    rows = emb_table[word_ids]                                   # (B, S, D)
    ref = (rows * pad_mask[..., None]).sum(axis=1) / lens[:, None].astype(jnp.float32)

    # 1) auto path (table fits -> resident-in-VMEM fast path, single vocab tile)
    out = jax.block_until_ready(word_embedding_average(word_ids, lens, emb_table))
    assert out.shape == (B, D) and out.dtype == jnp.float32
    assert jnp.allclose(out, ref, atol=1e-4, rtol=1e-4), "mismatch vs reference (resident)"

    # 2) forced streamed path (vocab tiled across the reduction grid axis)
    out_s = jax.block_until_ready(
        word_embedding_average(word_ids, lens, emb_table, max_resident_bytes=0))
    assert jnp.allclose(out_s, ref, atol=1e-4, rtol=1e-4), "mismatch vs reference (streamed)"

    # TODO(synk): rule/AstNode parsing and the vocabulary dict (string -> id) are
    # host-side Python with no tensor equivalent; only gather + mean is a kernel.
    print("KERNEL_OK")
</pallas_src>

<mosaic_0001>
module attributes {stable_mosaic.version = 11 : i64} {
  func.func @_avg_embed_kernel(%arg0: i32, %arg1: i32, %arg2: memref<8x12xi32, #tpu.memory_space<vmem>>, %arg3: memref<8x1xi32, #tpu.memory_space<vmem>>, %arg4: memref<1024x128xf32, #tpu.memory_space<vmem>>, %arg5: memref<8x128xf32, #tpu.memory_space<vmem>>, %arg6: memref<8x128xf32, #tpu.memory_space<vmem>>) attributes {dimension_semantics = [#tpu.dimension_semantics<parallel>, #tpu.dimension_semantics<arbitrary>], iteration_bounds = array<i64: 2, 1>, scalar_prefetch = 0 : i64, scratch_operands = 1 : i64, tpu.core_type = #tpu.core_type<tc>, window_params = [{transform_indices = @transform_0, window_bounds = array<i64: 8, 12>}, {transform_indices = @transform_1, window_bounds = array<i64: 8, 1>}, {transform_indices = @transform_2, window_bounds = array<i64: 1024, 128>}, {transform_indices = @transform_3, window_bounds = array<i64: 8, 128>}]} {
    %c0_i32 = arith.constant 0 : i32
    %0 = arith.cmpi eq, %arg1, %c0_i32 : i32
    %1 = arith.extui %0 : i1 to i32
    %c0_i32_0 = arith.constant 0 : i32
    %2 = arith.cmpi ne, %1, %c0_i32_0 : i32
    scf.if %2 {
      %cst_29 = arith.constant 0.000000e+00 : f32
      %397 = vector.broadcast %cst_29 : f32 to vector<8x128xf32>
      %c0_30 = arith.constant 0 : index
      %c0_31 = arith.constant 0 : index
      %398 = vector.load %arg6[%c0_30, %c0_31] : memref<8x128xf32, #tpu.memory_space<vmem>>, vector<8x128xf32>
      tpu.vector_store %arg6[%c0_30, %c0_31], %397 {strides = array<i32>} : memref<8x128xf32, #tpu.memory_space<vmem>>, vector<8x128xf32>,
    } else {
    }
    %c0 = arith.constant 0 : index
    %c0_1 = arith.constant 0 : index
    %3 = vector.load %arg2[%c0, %c0_1] : memref<8x12xi32, #tpu.memory_space<vmem>>, vector<8x12xi32>
    %c0_2 = arith.constant 0 : index
    %c0_3 = arith.constant 0 : index
    %4 = vector.load %arg3[%c0_2, %c0_3] : memref<8x1xi32, #tpu.memory_space<vmem>>, vector<8x1xi32>
    %5 = tpu.iota {dimensions = array<i32: 1>} : vector<8x12xi32>
    %6 = vector.broadcast %4 : vector<8x1xi32> to vector<8x12xi32>
    %7 = arith.cmpi slt, %5, %6 : vector<8x12xi32>
    %c-1_i32 = arith.constant -1 : i32
    %8 = vector.broadcast %c-1_i32 : i32 to vector<8x12xi32>
    %9 = arith.select %7, %3, %8 : vector<8x12xi1>, vector<8x12xi32>
    %cst = arith.constant 0.000000e+00 : f32
    %10 = vector.broadcast %cst : f32 to vector<8x128xf32>
    %c0_i32_4 = arith.constant 0 : i32
    %c1024_i32 = arith.constant 1024 : i32
    %11 = arith.muli %arg1, %c1024_i32 : i32
    %c256_i32 = arith.constant 256 : i32
    %12 = arith.muli %c0_i32_4, %c256_i32 : i32
    %13 = arith.addi %11, %12 : i32
    %14 = tpu.iota {dimensions = array<i32: 1>} : vector<1x256xi32>
    %15 = vector.broadcast %13 : i32 to vector<1x256xi32>
    %16 = arith.addi %15, %14 : vector<1x256xi32>
    %17 = vector.extract_strided_slice %9 {offsets = [0, 0], sizes = [8, 1], strides = [1, 1]} : vector<8x12xi32> to vector<8x1xi32>
    %18 = vector.broadcast %17 : vector<8x1xi32> to vector<8x256xi32>
    %19 = vector.broadcast %16 : vector<1x256xi32> to vector<8x256xi32>
    %20 = arith.cmpi eq, %18, %19 : vector<8x256xi32>
    %21 = arith.extui %20 : vector<8x256xi1> to vector<8x256xi32>
    %22 = arith.sitofp %21 : vector<8x256xi32> to vector<8x256xf32>
    %23 = vector.extract_strided_slice %9 {offsets = [0, 1], sizes = [8, 1], strides = [1, 1]} : vector<8x12xi32> to vector<8x1xi32>
    %24 = vector.broadcast %23 : vector<8x1xi32> to vector<8x256xi32>
    %25 = vector.broadcast %16 : vector<1x256xi32> to vector<8x256xi32>
    %26 = arith.cmpi eq, %24, %25 : vector<8x256xi32>
    %27 = arith.extui %26 : vector<8x256xi1> to vector<8x256xi32>
    %28 = arith.sitofp %27 : vector<8x256xi32> to vector<8x256xf32>
    %29 = arith.addf %22, %28 : vector<8x256xf32>
    %30 = vector.extract_strided_slice %9 {offsets = [0, 2], sizes = [8, 1], strides = [1, 1]} : vector<8x12xi32> to vector<8x1xi32>
    %31 = vector.broadcast %30 : vector<8x1xi32> to vector<8x256xi32>
    %32 = vector.broadcast %16 : vector<1x256xi32> to vector<8x256xi32>
    %33 = arith.cmpi eq, %31, %32 : vector<8x256xi32>
    %34 = arith.extui %33 : vector<8x256xi1> to vector<8x256xi32>
    %35 = arith.sitofp %34 : vector<8x256xi32> to vector<8x256xf32>
    %36 = arith.addf %29, %35 : vector<8x256xf32>
    %37 = vector.extract_strided_slice %9 {offsets = [0, 3], sizes = [8, 1], strides = [1, 1]} : vector<8x12xi32> to vector<8x1xi32>
    %38 = vector.broadcast %37 : vector<8x1xi32> to vector<8x256xi32>
    %39 = vector.broadcast %16 : vector<1x256xi32> to vector<8x256xi32>
    %40 = arith.cmpi eq, %38, %39 : vector<8x256xi32>
    %41 = arith.extui %40 : vector<8x256xi1> to vector<8x256xi32>
    %42 = arith.sitofp %41 : vector<8x256xi32> to vector<8x256xf32>
    %43 = arith.addf %36, %42 : vector<8x256xf32>
    %44 = vector.extract_strided_slice %9 {offsets = [0, 4], sizes = [8, 1], strides = [1, 1]} : vector<8x12xi32> to vector<8x1xi32>
    %45 = vector.broadcast %44 : vector<8x1xi32> to vector<8x256xi32>
    %46 = vector.broadcast %16 : vector<1x256xi32> to vector<8x256xi32>
    %47 = arith.cmpi eq, %45, %46 : vector<8x256xi32>
    %48 = arith.extui %47 : vector<8x256xi1> to vector<8x256xi32>
    %49 = arith.sitofp %48 : vector<8x256xi32> to vector<8x256xf32>
    %50 = arith.addf %43, %49 : vector<8x256xf32>
    %51 = vector.extract_strided_slice %9 {offsets = [0, 5], sizes = [8, 1], strides = [1, 1]} : vector<8x12xi32> to vector<8x1xi32>
    %52 = vector.broadcast %51 : vector<8x1xi32> to vector<8x256xi32>
    %53 = vector.broadcast %16 : vector<1x256xi32> to vector<8x256xi32>
    %54 = arith.cmpi eq, %52, %53 : vector<8x256xi32>
    %55 = arith.extui %54 : vector<8x256xi1> to vector<8x256xi32>
    %56 = arith.sitofp %55 : vector<8x256xi32> to vector<8x256xf32>
    %57 = arith.addf %50, %56 : vector<8x256xf32>
    %58 = vector.extract_strided_slice %9 {offsets = [0, 6], sizes = [8, 1], strides = [1, 1]} : vector<8x12xi32> to vector<8x1xi32>
    %59 = vector.broadcast %58 : vector<8x1xi32> to vector<8x256xi32>
    %60 = vector.broadcast %16 : vector<1x256xi32> to vector<8x256xi32>
    %61 = arith.cmpi eq, %59, %60 : vector<8x256xi32>
    %62 = arith.extui %61 : vector<8x256xi1> to vector<8x256xi32>
    %63 = arith.sitofp %62 : vector<8x256xi32> to vector<8x256xf32>
    %64 = arith.addf %57, %63 : vector<8x256xf32>
    %65 = vector.extract_strided_slice %9 {offsets = [0, 7], sizes = [8, 1], strides = [1, 1]} : vector<8x12xi32> to vector<8x1xi32>
    %66 = vector.broadcast %65 : vector<8x1xi32> to vector<8x256xi32>
    %67 = vector.broadcast %16 : vector<1x256xi32> to vector<8x256xi32>
    %68 = arith.cmpi eq, %66, %67 : vector<8x256xi32>
    %69 = arith.extui %68 : vector<8x256xi1> to vector<8x256xi32>
    %70 = arith.sitofp %69 : vector<8x256xi32> to vector<8x256xf32>
    %71 = arith.addf %64, %70 : vector<8x256xf32>
    %72 = vector.extract_strided_slice %9 {offsets = [0, 8], sizes = [8, 1], strides = [1, 1]} : vector<8x12xi32> to vector<8x1xi32>
    %73 = vector.broadcast %72 : vector<8x1xi32> to vector<8x256xi32>
    %74 = vector.broadcast %16 : vector<1x256xi32> to vector<8x256xi32>
    %75 = arith.cmpi eq, %73, %74 : vector<8x256xi32>
    %76 = arith.extui %75 : vector<8x256xi1> to vector<8x256xi32>
    %77 = arith.sitofp %76 : vector<8x256xi32> to vector<8x256xf32>
    %78 = arith.addf %71, %77 : vector<8x256xf32>
    %79 = vector.extract_strided_slice %9 {offsets = [0, 9], sizes = [8, 1], strides = [1, 1]} : vector<8x12xi32> to vector<8x1xi32>
    %80 = vector.broadcast %79 : vector<8x1xi32> to vector<8x256xi32>
    %81 = vector.broadcast %16 : vector<1x256xi32> to vector<8x256xi32>
    %82 = arith.cmpi eq, %80, %81 : vector<8x256xi32>
    %83 = arith.extui %82 : vector<8x256xi1> to vector<8x256xi32>
    %84 = arith.sitofp %83 : vector<8x256xi32> to vector<8x256xf32>
    %85 = arith.addf %78, %84 : vector<8x256xf32>
    %86 = vector.extract_strided_slice %9 {offsets = [0, 10], sizes = [8, 1], strides = [1, 1]} : vector<8x12xi32> to vector<8x1xi32>
    %87 = vector.broadcast %86 : vector<8x1xi32> to vector<8x256xi32>
    %88 = vector.broadcast %16 : vector<1x256xi32> to vector<8x256xi32>
    %89 = arith.cmpi eq, %87, %88 : vector<8x256xi32>
    %90 = arith.extui %89 : vector<8x256xi1> to vector<8x256xi32>
    %91 = arith.sitofp %90 : vector<8x256xi32> to vector<8x256xf32>
    %92 = arith.addf %85, %91 : vector<8x256xf32>
    %93 = vector.extract_strided_slice %9 {offsets = [0, 11], sizes = [8, 1], strides = [1, 1]} : vector<8x12xi32> to vector<8x1xi32>
    %94 = vector.broadcast %93 : vector<8x1xi32> to vector<8x256xi32>
    %95 = vector.broadcast %16 : vector<1x256xi32> to vector<8x256xi32>
    %96 = arith.cmpi eq, %94, %95 : vector<8x256xi32>
    %97 = arith.extui %96 : vector<8x256xi1> to vector<8x256xi32>
    %98 = arith.sitofp %97 : vector<8x256xi32> to vector<8x256xf32>
    %99 = arith.addf %92, %98 : vector<8x256xf32>
    %c256_i32_5 = arith.constant 256 : i32
    %100 = arith.muli %c0_i32_4, %c256_i32_5 : i32
    %101 = tpu.assume_multiple %100, 256 : i32
    %102 = arith.index_cast %101 : i32 to index
    %c0_6 = arith.constant 0 : index
    %103 = vector.load %arg4[%102, %c0_6] : memref<1024x128xf32, #tpu.memory_space<vmem>>, vector<256x128xf32>
    %cst_7 = arith.constant dense<0.000000e+00> : vector<8x128xf32>
    %104 = tpu.matmul %99, %103, %cst_7 {dimension_numbers = #tpu.dot_dimension_numbers<[1], [0], [0], [1], [0, 0, 1, 1], [], []>} : vector<8x256xf32>, vector<256x128xf32>, vector<8x128xf32> -> vector<8x128xf32>
    %105 = arith.addf %10, %104 : vector<8x128xf32>
    %c1_i32 = arith.constant 1 : i32
    %c1024_i32_8 = arith.constant 1024 : i32
    %106 = arith.muli %arg1, %c1024_i32_8 : i32
    %c256_i32_9 = arith.constant 256 : i32
    %107 = arith.muli %c1_i32, %c256_i32_9 : i32
    %108 = arith.addi %106, %107 : i32
    %109 = tpu.iota {dimensions = array<i32: 1>} : vector<1x256xi32>
    %110 = vector.broadcast %108 : i32 to vector<1x256xi32>
    %111 = arith.addi %110, %109 : vector<1x256xi32>
    %112 = vector.extract_strided_slice %9 {offsets = [0, 0], sizes = [8, 1], strides = [1, 1]} : vector<8x12xi32> to vector<8x1xi32>
    %113 = vector.broadcast %112 : vector<8x1xi32> to vector<8x256xi32>
    %114 = vector.broadcast %111 : vector<1x256xi32> to vector<8x256xi32>
    %115 = arith.cmpi eq, %113, %114 : vector<8x256xi32>
    %116 = arith.extui %115 : vector<8x256xi1> to vector<8x256xi32>
    %117 = arith.sitofp %116 : vector<8x256xi32> to vector<8x256xf32>
    %118 = vector.extract_strided_slice %9 {offsets = [0, 1], sizes = [8, 1], strides = [1, 1]} : vector<8x12xi32> to vector<8x1xi32>
    %119 = vector.broadcast %118 : vector<8x1xi32> to vector<8x256xi32>
    %120 = vector.broadcast %111 : vector<1x256xi32> to vector<8x256xi32>
    %121 = arith.cmpi eq, %119, %120 : vector<8x256xi32>
    %122 = arith.extui %121 : vector<8x256xi1> to vector<8x256xi32>
    %123 = arith.sitofp %122 : vector<8x256xi32> to vector<8x256xf32>
    %124 = arith.addf %117, %123 : vector<8x256xf32>
    %125 = vector.extract_strided_slice %9 {offsets = [0, 2], sizes = [8, 1], strides = [1, 1]} : vector<8x12xi32> to vector<8x1xi32>
    %126 = vector.broadcast %125 : vector<8x1xi32> to vector<8x256xi32>
    %127 = vector.broadcast %111 : vector<1x256xi32> to vector<8x256xi32>
    %128 = arith.cmpi eq, %126, %127 : vector<8x256xi32>
    %129 = arith.extui %128 : vector<8x256xi1> to vector<8x256xi32>
    %130 = arith.sitofp %129 : vector<8x256xi32> to vector<8x256xf32>
    %131 = arith.addf %124, %130 : vector<8x256xf32>
    %132 = vector.extract_strided_slice %9 {offsets = [0, 3], sizes = [8, 1], strides = [1, 1]} : vector<8x12xi32> to vector<8x1xi32>
    %133 = vector.broadcast %132 : vector<8x1xi32> to vector<8x256xi32>
    %134 = vector.broadcast %111 : vector<1x256xi32> to vector<8x256xi32>
    %135 = arith.cmpi eq, %133, %134 : vector<8x256xi32>
    %136 = arith.extui %135 : vector<8x256xi1> to vector<8x256xi32>
    %137 = arith.sitofp %136 : vector<8x256xi32> to vector<8x256xf32>
    %138 = arith.addf %131, %137 : vector<8x256xf32>
    %139 = vector.extract_strided_slice %9 {offsets = [0, 4], sizes = [8, 1], strides = [1, 1]} : vector<8x12xi32> to vector<8x1xi32>
    %140 = vector.broadcast %139 : vector<8x1xi32> to vector<8x256xi32>
    %141 = vector.broadcast %111 : vector<1x256xi32> to vector<8x256xi32>
    %142 = arith.cmpi eq, %140, %141 : vector<8x256xi32>
    %143 = arith.extui %142 : vector<8x256xi1> to vector<8x256xi32>
    %144 = arith.sitofp %143 : vector<8x256xi32> to vector<8x256xf32>
    %145 = arith.addf %138, %144 : vector<8x256xf32>
    %146 = vector.extract_strided_slice %9 {offsets = [0, 5], sizes = [8, 1], strides = [1, 1]} : vector<8x12xi32> to vector<8x1xi32>
    %147 = vector.broadcast %146 : vector<8x1xi32> to vector<8x256xi32>
    %148 = vector.broadcast %111 : vector<1x256xi32> to vector<8x256xi32>
    %149 = arith.cmpi eq, %147, %148 : vector<8x256xi32>
    %150 = arith.extui %149 : vector<8x256xi1> to vector<8x256xi32>
    %151 = arith.sitofp %150 : vector<8x256xi32> to vector<8x256xf32>
    %152 = arith.addf %145, %151 : vector<8x256xf32>
    %153 = vector.extract_strided_slice %9 {offsets = [0, 6], sizes = [8, 1], strides = [1, 1]} : vector<8x12xi32> to vector<8x1xi32>
    %154 = vector.broadcast %153 : vector<8x1xi32> to vector<8x256xi32>
    %155 = vector.broadcast %111 : vector<1x256xi32> to vector<8x256xi32>
    %156 = arith.cmpi eq, %154, %155 : vector<8x256xi32>
    %157 = arith.extui %156 : vector<8x256xi1> to vector<8x256xi32>
    %158 = arith.sitofp %157 : vector<8x256xi32> to vector<8x256xf32>
    %159 = arith.addf %152, %158 : vector<8x256xf32>
    %160 = vector.extract_strided_slice %9 {offsets = [0, 7], sizes = [8, 1], strides = [1, 1]} : vector<8x12xi32> to vector<8x1xi32>
    %161 = vector.broadcast %160 : vector<8x1xi32> to vector<8x256xi32>
    %162 = vector.broadcast %111 : vector<1x256xi32> to vector<8x256xi32>
    %163 = arith.cmpi eq, %161, %162 : vector<8x256xi32>
    %164 = arith.extui %163 : vector<8x256xi1> to vector<8x256xi32>
    %165 = arith.sitofp %164 : vector<8x256xi32> to vector<8x256xf32>
    %166 = arith.addf %159, %165 : vector<8x256xf32>
    %167 = vector.extract_strided_slice %9 {offsets = [0, 8], sizes = [8, 1], strides = [1, 1]} : vector<8x12xi32> to vector<8x1xi32>
    %168 = vector.broadcast %167 : vector<8x1xi32> to vector<8x256xi32>
    %169 = vector.broadcast %111 : vector<1x256xi32> to vector<8x256xi32>
    %170 = arith.cmpi eq, %168, %169 : vector<8x256xi32>
    %171 = arith.extui %170 : vector<8x256xi1> to vector<8x256xi32>
    %172 = arith.sitofp %171 : vector<8x256xi32> to vector<8x256xf32>
    %173 = arith.addf %166, %172 : vector<8x256xf32>
    %174 = vector.extract_strided_slice %9 {offsets = [0, 9], sizes = [8, 1], strides = [1, 1]} : vector<8x12xi32> to vector<8x1xi32>
    %175 = vector.broadcast %174 : vector<8x1xi32> to vector<8x256xi32>
    %176 = vector.broadcast %111 : vector<1x256xi32> to vector<8x256xi32>
    %177 = arith.cmpi eq, %175, %176 : vector<8x256xi32>
    %178 = arith.extui %177 : vector<8x256xi1> to vector<8x256xi32>
    %179 = arith.sitofp %178 : vector<8x256xi32> to vector<8x256xf32>
    %180 = arith.addf %173, %179 : vector<8x256xf32>
    %181 = vector.extract_strided_slice %9 {offsets = [0, 10], sizes = [8, 1], strides = [1, 1]} : vector<8x12xi32> to vector<8x1xi32>
    %182 = vector.broadcast %181 : vector<8x1xi32> to vector<8x256xi32>
    %183 = vector.broadcast %111 : vector<1x256xi32> to vector<8x256xi32>
    %184 = arith.cmpi eq, %182, %183 : vector<8x256xi32>
    %185 = arith.extui %184 : vector<8x256xi1> to vector<8x256xi32>
    %186 = arith.sitofp %185 : vector<8x256xi32> to vector<8x256xf32>
    %187 = arith.addf %180, %186 : vector<8x256xf32>
    %188 = vector.extract_strided_slice %9 {offsets = [0, 11], sizes = [8, 1], strides = [1, 1]} : vector<8x12xi32> to vector<8x1xi32>
    %189 = vector.broadcast %188 : vector<8x1xi32> to vector<8x256xi32>
    %190 = vector.broadcast %111 : vector<1x256xi32> to vector<8x256xi32>
    %191 = arith.cmpi eq, %189, %190 : vector<8x256xi32>
    %192 = arith.extui %191 : vector<8x256xi1> to vector<8x256xi32>
    %193 = arith.sitofp %192 : vector<8x256xi32> to vector<8x256xf32>
    %194 = arith.addf %187, %193 : vector<8x256xf32>
    %c256_i32_10 = arith.constant 256 : i32
    %195 = arith.muli %c1_i32, %c256_i32_10 : i32
    %196 = tpu.assume_multiple %195, 256 : i32
    %197 = arith.index_cast %196 : i32 to index
    %c0_11 = arith.constant 0 : index
    %198 = vector.load %arg4[%197, %c0_11] : memref<1024x128xf32, #tpu.memory_space<vmem>>, vector<256x128xf32>
    %cst_12 = arith.constant dense<0.000000e+00> : vector<8x128xf32>
    %199 = tpu.matmul %194, %198, %cst_12 {dimension_numbers = #tpu.dot_dimension_numbers<[1], [0], [0], [1], [0, 0, 1, 1], [], []>} : vector<8x256xf32>, vector<256x128xf32>, vector<8x128xf32> -> vector<8x128xf32>
    %200 = arith.addf %105, %199 : vector<8x128xf32>
    %c2_i32 = arith.constant 2 : i32
    %c1024_i32_13 = arith.constant 1024 : i32
    %201 = arith.muli %arg1, %c1024_i32_13 : i32
    %c256_i32_14 = arith.constant 256 : i32
    %202 = arith.muli %c2_i32, %c256_i32_14 : i32
    %203 = arith.addi %201, %202 : i32
    %204 = tpu.iota {dimensions = array<i32: 1>} : vector<1x256xi32>
    %205 = vector.broadcast %203 : i32 to vector<1x256xi32>
    %206 = arith.addi %205, %204 : vector<1x256xi32>
    %207 = vector.extract_strided_slice %9 {offsets = [0, 0], sizes = [8, 1], strides = [1, 1]} : vector<8x12xi32> to vector<8x1xi32>
    %208 = vector.broadcast %207 : vector<8x1xi32> to vector<8x256xi32>
    %209 = vector.broadcast %206 : vector<1x256xi32> to vector<8x256xi32>
    %210 = arith.cmpi eq, %208, %209 : vector<8x256xi32>
    %211 = arith.extui %210 : vector<8x256xi1> to vector<8x256xi32>
    %212 = arith.sitofp %211 : vector<8x256xi32> to vector<8x256xf32>
    %213 = vector.extract_strided_slice %9 {offsets = [0, 1], sizes = [8, 1], strides = [1, 1]} : vector<8x12xi32> to vector<8x1xi32>
    %214 = vector.broadcast %213 : vector<8x1xi32> to vector<8x256xi32>
    %215 = vector.broadcast %206 : vector<1x256xi32> to vector<8x256xi32>
    %216 = arith.cmpi eq, %214, %215 : vector<8x256xi32>
    %217 = arith.extui %216 : vector<8x256xi1> to vector<8x256xi32>
    %218 = arith.sitofp %217 : vector<8x256xi32> to vector<8x256xf32>
    %219 = arith.addf %212, %218 : vector<8x256xf32>
    %220 = vector.extract_strided_slice %9 {offsets = [0, 2], sizes = [8, 1], strides = [1, 1]} : vector<8x12xi32> to vector<8x1xi32>
    %221 = vector.broadcast %220 : vector<8x1xi32> to vector<8x256xi32>
    %222 = vector.broadcast %206 : vector<1x256xi32> to vector<8x256xi32>
    %223 = arith.cmpi eq, %221, %222 : vector<8x256xi32>
    %224 = arith.extui %223 : vector<8x256xi1> to vector<8x256xi32>
    %225 = arith.sitofp %224 : vector<8x256xi32> to vector<8x256xf32>
    %226 = arith.addf %219, %225 : vector<8x256xf32>
    %227 = vector.extract_strided_slice %9 {offsets = [0, 3], sizes = [8, 1], strides = [1, 1]} : vector<8x12xi32> to vector<8x1xi32>
    %228 = vector.broadcast %227 : vector<8x1xi32> to vector<8x256xi32>
    %229 = vector.broadcast %206 : vector<1x256xi32> to vector<8x256xi32>
    %230 = arith.cmpi eq, %228, %229 : vector<8x256xi32>
    %231 = arith.extui %230 : vector<8x256xi1> to vector<8x256xi32>
    %232 = arith.sitofp %231 : vector<8x256xi32> to vector<8x256xf32>
    %233 = arith.addf %226, %232 : vector<8x256xf32>
    %234 = vector.extract_strided_slice %9 {offsets = [0, 4], sizes = [8, 1], strides = [1, 1]} : vector<8x12xi32> to vector<8x1xi32>
    %235 = vector.broadcast %234 : vector<8x1xi32> to vector<8x256xi32>
    %236 = vector.broadcast %206 : vector<1x256xi32> to vector<8x256xi32>
    %237 = arith.cmpi eq, %235, %236 : vector<8x256xi32>
    %238 = arith.extui %237 : vector<8x256xi1> to vector<8x256xi32>
    %239 = arith.sitofp %238 : vector<8x256xi32> to vector<8x256xf32>
    %240 = arith.addf %233, %239 : vector<8x256xf32>
    %241 = vector.extract_strided_slice %9 {offsets = [0, 5], sizes = [8, 1], strides = [1, 1]} : vector<8x12xi32> to vector<8x1xi32>
    %242 = vector.broadcast %241 : vector<8x1xi32> to vector<8x256xi32>
    %243 = vector.broadcast %206 : vector<1x256xi32> to vector<8x256xi32>
    %244 = arith.cmpi eq, %242, %243 : vector<8x256xi32>
    %245 = arith.extui %244 : vector<8x256xi1> to vector<8x256xi32>
    %246 = arith.sitofp %245 : vector<8x256xi32> to vector<8x256xf32>
    %247 = arith.addf %240, %246 : vector<8x256xf32>
    %248 = vector.extract_strided_slice %9 {offsets = [0, 6], sizes = [8, 1], strides = [1, 1]} : vector<8x12xi32> to vector<8x1xi32>
    %249 = vector.broadcast %248 : vector<8x1xi32> to vector<8x256xi32>
    %250 = vector.broadcast %206 : vector<1x256xi32> to vector<8x256xi32>
    %251 = arith.cmpi eq, %249, %250 : vector<8x256xi32>
    %252 = arith.extui %251 : vector<8x256xi1> to vector<8x256xi32>
    %253 = arith.sitofp %252 : vector<8x256xi32> to vector<8x256xf32>
    %254 = arith.addf %247, %253 : vector<8x256xf32>
    %255 = vector.extract_strided_slice %9 {offsets = [0, 7], sizes = [8, 1], strides = [1, 1]} : vector<8x12xi32> to vector<8x1xi32>
    %256 = vector.broadcast %255 : vector<8x1xi32> to vector<8x256xi32>
    %257 = vector.broadcast %206 : vector<1x256xi32> to vector<8x256xi32>
    %258 = arith.cmpi eq, %256, %257 : vector<8x256xi32>
    %259 = arith.extui %258 : vector<8x256xi1> to vector<8x256xi32>
    %260 = arith.sitofp %259 : vector<8x256xi32> to vector<8x256xf32>
    %261 = arith.addf %254, %260 : vector<8x256xf32>
    %262 = vector.extract_strided_slice %9 {offsets = [0, 8], sizes = [8, 1], strides = [1, 1]} : vector<8x12xi32> to vector<8x1xi32>
    %263 = vector.broadcast %262 : vector<8x1xi32> to vector<8x256xi32>
    %264 = vector.broadcast %206 : vector<1x256xi32> to vector<8x256xi32>
    %265 = arith.cmpi eq, %263, %264 : vector<8x256xi32>
    %266 = arith.extui %265 : vector<8x256xi1> to vector<8x256xi32>
    %267 = arith.sitofp %266 : vector<8x256xi32> to vector<8x256xf32>
    %268 = arith.addf %261, %267 : vector<8x256xf32>
    %269 = vector.extract_strided_slice %9 {offsets = [0, 9], sizes = [8, 1], strides = [1, 1]} : vector<8x12xi32> to vector<8x1xi32>
    %270 = vector.broadcast %269 : vector<8x1xi32> to vector<8x256xi32>
    %271 = vector.broadcast %206 : vector<1x256xi32> to vector<8x256xi32>
    %272 = arith.cmpi eq, %270, %271 : vector<8x256xi32>
    %273 = arith.extui %272 : vector<8x256xi1> to vector<8x256xi32>
    %274 = arith.sitofp %273 : vector<8x256xi32> to vector<8x256xf32>
    %275 = arith.addf %268, %274 : vector<8x256xf32>
    %276 = vector.extract_strided_slice %9 {offsets = [0, 10], sizes = [8, 1], strides = [1, 1]} : vector<8x12xi32> to vector<8x1xi32>
    %277 = vector.broadcast %276 : vector<8x1xi32> to vector<8x256xi32>
    %278 = vector.broadcast %206 : vector<1x256xi32> to vector<8x256xi32>
    %279 = arith.cmpi eq, %277, %278 : vector<8x256xi32>
    %280 = arith.extui %279 : vector<8x256xi1> to vector<8x256xi32>
    %281 = arith.sitofp %280 : vector<8x256xi32> to vector<8x256xf32>
    %282 = arith.addf %275, %281 : vector<8x256xf32>
    %283 = vector.extract_strided_slice %9 {offsets = [0, 11], sizes = [8, 1], strides = [1, 1]} : vector<8x12xi32> to vector<8x1xi32>
    %284 = vector.broadcast %283 : vector<8x1xi32> to vector<8x256xi32>
    %285 = vector.broadcast %206 : vector<1x256xi32> to vector<8x256xi32>
    %286 = arith.cmpi eq, %284, %285 : vector<8x256xi32>
    %287 = arith.extui %286 : vector<8x256xi1> to vector<8x256xi32>
    %288 = arith.sitofp %287 : vector<8x256xi32> to vector<8x256xf32>
    %289 = arith.addf %282, %288 : vector<8x256xf32>
    %c256_i32_15 = arith.constant 256 : i32
    %290 = arith.muli %c2_i32, %c256_i32_15 : i32
    %291 = tpu.assume_multiple %290, 256 : i32
    %292 = arith.index_cast %291 : i32 to index
    %c0_16 = arith.constant 0 : index
    %293 = vector.load %arg4[%292, %c0_16] : memref<1024x128xf32, #tpu.memory_space<vmem>>, vector<256x128xf32>
    %cst_17 = arith.constant dense<0.000000e+00> : vector<8x128xf32>
    %294 = tpu.matmul %289, %293, %cst_17 {dimension_numbers = #tpu.dot_dimension_numbers<[1], [0], [0], [1], [0, 0, 1, 1], [], []>} : vector<8x256xf32>, vector<256x128xf32>, vector<8x128xf32> -> vector<8x128xf32>
    %295 = arith.addf %200, %294 : vector<8x128xf32>
    %c3_i32 = arith.constant 3 : i32
    %c1024_i32_18 = arith.constant 1024 : i32
    %296 = arith.muli %arg1, %c1024_i32_18 : i32
    %c256_i32_19 = arith.constant 256 : i32
    %297 = arith.muli %c3_i32, %c256_i32_19 : i32
    %298 = arith.addi %296, %297 : i32
    %299 = tpu.iota {dimensions = array<i32: 1>} : vector<1x256xi32>
    %300 = vector.broadcast %298 : i32 to vector<1x256xi32>
    %301 = arith.addi %300, %299 : vector<1x256xi32>
    %302 = vector.extract_strided_slice %9 {offsets = [0, 0], sizes = [8, 1], strides = [1, 1]} : vector<8x12xi32> to vector<8x1xi32>
    %303 = vector.broadcast %302 : vector<8x1xi32> to vector<8x256xi32>
    %304 = vector.broadcast %301 : vector<1x256xi32> to vector<8x256xi32>
    %305 = arith.cmpi eq, %303, %304 : vector<8x256xi32>
    %306 = arith.extui %305 : vector<8x256xi1> to vector<8x256xi32>
    %307 = arith.sitofp %306 : vector<8x256xi32> to vector<8x256xf32>
    %308 = vector.extract_strided_slice %9 {offsets = [0, 1], sizes = [8, 1], strides = [1, 1]} : vector<8x12xi32> to vector<8x1xi32>
    %309 = vector.broadcast %308 : vector<8x1xi32> to vector<8x256xi32>
    %310 = vector.broadcast %301 : vector<1x256xi32> to vector<8x256xi32>
    %311 = arith.cmpi eq, %309, %310 : vector<8x256xi32>
    %312 = arith.extui %311 : vector<8x256xi1> to vector<8x256xi32>
    %313 = arith.sitofp %312 : vector<8x256xi32> to vector<8x256xf32>
    %314 = arith.addf %307, %313 : vector<8x256xf32>
    %315 = vector.extract_strided_slice %9 {offsets = [0, 2], sizes = [8, 1], strides = [1, 1]} : vector<8x12xi32> to vector<8x1xi32>
    %316 = vector.broadcast %315 : vector<8x1xi32> to vector<8x256xi32>
    %317 = vector.broadcast %301 : vector<1x256xi32> to vector<8x256xi32>
    %318 = arith.cmpi eq, %316, %317 : vector<8x256xi32>
    %319 = arith.extui %318 : vector<8x256xi1> to vector<8x256xi32>
    %320 = arith.sitofp %319 : vector<8x256xi32> to vector<8x256xf32>
    %321 = arith.addf %314, %320 : vector<8x256xf32>
    %322 = vector.extract_strided_slice %9 {offsets = [0, 3], sizes = [8, 1], strides = [1, 1]} : vector<8x12xi32> to vector<8x1xi32>
    %323 = vector.broadcast %322 : vector<8x1xi32> to vector<8x256xi32>
    %324 = vector.broadcast %301 : vector<1x256xi32> to vector<8x256xi32>
    %325 = arith.cmpi eq, %323, %324 : vector<8x256xi32>
    %326 = arith.extui %325 : vector<8x256xi1> to vector<8x256xi32>
    %327 = arith.sitofp %326 : vector<8x256xi32> to vector<8x256xf32>
    %328 = arith.addf %321, %327 : vector<8x256xf32>
    %329 = vector.extract_strided_slice %9 {offsets = [0, 4], sizes = [8, 1], strides = [1, 1]} : vector<8x12xi32> to vector<8x1xi32>
    %330 = vector.broadcast %329 : vector<8x1xi32> to vector<8x256xi32>
    %331 = vector.broadcast %301 : vector<1x256xi32> to vector<8x256xi32>
    %332 = arith.cmpi eq, %330, %331 : vector<8x256xi32>
    %333 = arith.extui %332 : vector<8x256xi1> to vector<8x256xi32>
    %334 = arith.sitofp %333 : vector<8x256xi32> to vector<8x256xf32>
    %335 = arith.addf %328, %334 : vector<8x256xf32>
    %336 = vector.extract_strided_slice %9 {offsets = [0, 5], sizes = [8, 1], strides = [1, 1]} : vector<8x12xi32> to vector<8x1xi32>
    %337 = vector.broadcast %336 : vector<8x1xi32> to vector<8x256xi32>
    %338 = vector.broadcast %301 : vector<1x256xi32> to vector<8x256xi32>
    %339 = arith.cmpi eq, %337, %338 : vector<8x256xi32>
    %340 = arith.extui %339 : vector<8x256xi1> to vector<8x256xi32>
    %341 = arith.sitofp %340 : vector<8x256xi32> to vector<8x256xf32>
    %342 = arith.addf %335, %341 : vector<8x256xf32>
    %343 = vector.extract_strided_slice %9 {offsets = [0, 6], sizes = [8, 1], strides = [1, 1]} : vector<8x12xi32> to vector<8x1xi32>
    %344 = vector.broadcast %343 : vector<8x1xi32> to vector<8x256xi32>
    %345 = vector.broadcast %301 : vector<1x256xi32> to vector<8x256xi32>
    %346 = arith.cmpi eq, %344, %345 : vector<8x256xi32>
    %347 = arith.extui %346 : vector<8x256xi1> to vector<8x256xi32>
    %348 = arith.sitofp %347 : vector<8x256xi32> to vector<8x256xf32>
    %349 = arith.addf %342, %348 : vector<8x256xf32>
    %350 = vector.extract_strided_slice %9 {offsets = [0, 7], sizes = [8, 1], strides = [1, 1]} : vector<8x12xi32> to vector<8x1xi32>
    %351 = vector.broadcast %350 : vector<8x1xi32> to vector<8x256xi32>
    %352 = vector.broadcast %301 : vector<1x256xi32> to vector<8x256xi32>
    %353 = arith.cmpi eq, %351, %352 : vector<8x256xi32>
    %354 = arith.extui %353 : vector<8x256xi1> to vector<8x256xi32>
    %355 = arith.sitofp %354 : vector<8x256xi32> to vector<8x256xf32>
    %356 = arith.addf %349, %355 : vector<8x256xf32>
    %357 = vector.extract_strided_slice %9 {offsets = [0, 8], sizes = [8, 1], strides = [1, 1]} : vector<8x12xi32> to vector<8x1xi32>
    %358 = vector.broadcast %357 : vector<8x1xi32> to vector<8x256xi32>
    %359 = vector.broadcast %301 : vector<1x256xi32> to vector<8x256xi32>
    %360 = arith.cmpi eq, %358, %359 : vector<8x256xi32>
    %361 = arith.extui %360 : vector<8x256xi1> to vector<8x256xi32>
    %362 = arith.sitofp %361 : vector<8x256xi32> to vector<8x256xf32>
    %363 = arith.addf %356, %362 : vector<8x256xf32>
    %364 = vector.extract_strided_slice %9 {offsets = [0, 9], sizes = [8, 1], strides = [1, 1]} : vector<8x12xi32> to vector<8x1xi32>
    %365 = vector.broadcast %364 : vector<8x1xi32> to vector<8x256xi32>
    %366 = vector.broadcast %301 : vector<1x256xi32> to vector<8x256xi32>
    %367 = arith.cmpi eq, %365, %366 : vector<8x256xi32>
    %368 = arith.extui %367 : vector<8x256xi1> to vector<8x256xi32>
    %369 = arith.sitofp %368 : vector<8x256xi32> to vector<8x256xf32>
    %370 = arith.addf %363, %369 : vector<8x256xf32>
    %371 = vector.extract_strided_slice %9 {offsets = [0, 10], sizes = [8, 1], strides = [1, 1]} : vector<8x12xi32> to vector<8x1xi32>
    %372 = vector.broadcast %371 : vector<8x1xi32> to vector<8x256xi32>
    %373 = vector.broadcast %301 : vector<1x256xi32> to vector<8x256xi32>
    %374 = arith.cmpi eq, %372, %373 : vector<8x256xi32>
    %375 = arith.extui %374 : vector<8x256xi1> to vector<8x256xi32>
    %376 = arith.sitofp %375 : vector<8x256xi32> to vector<8x256xf32>
    %377 = arith.addf %370, %376 : vector<8x256xf32>
    %378 = vector.extract_strided_slice %9 {offsets = [0, 11], sizes = [8, 1], strides = [1, 1]} : vector<8x12xi32> to vector<8x1xi32>
    %379 = vector.broadcast %378 : vector<8x1xi32> to vector<8x256xi32>
    %380 = vector.broadcast %301 : vector<1x256xi32> to vector<8x256xi32>
    %381 = arith.cmpi eq, %379, %380 : vector<8x256xi32>
    %382 = arith.extui %381 : vector<8x256xi1> to vector<8x256xi32>
    %383 = arith.sitofp %382 : vector<8x256xi32> to vector<8x256xf32>
    %384 = arith.addf %377, %383 : vector<8x256xf32>
    %c256_i32_20 = arith.constant 256 : i32
    %385 = arith.muli %c3_i32, %c256_i32_20 : i32
    %386 = tpu.assume_multiple %385, 256 : i32
    %387 = arith.index_cast %386 : i32 to index
    %c0_21 = arith.constant 0 : index
    %388 = vector.load %arg4[%387, %c0_21] : memref<1024x128xf32, #tpu.memory_space<vmem>>, vector<256x128xf32>
    %cst_22 = arith.constant dense<0.000000e+00> : vector<8x128xf32>
    %389 = tpu.matmul %384, %388, %cst_22 {dimension_numbers = #tpu.dot_dimension_numbers<[1], [0], [0], [1], [0, 0, 1, 1], [], []>} : vector<8x256xf32>, vector<256x128xf32>, vector<8x128xf32> -> vector<8x128xf32>
    %390 = arith.addf %295, %389 : vector<8x128xf32>
    %c4_i32 = arith.constant 4 : i32
    %c0_23 = arith.constant 0 : index
    %c0_24 = arith.constant 0 : index
    %391 = vector.load %arg6[%c0_23, %c0_24] : memref<8x128xf32, #tpu.memory_space<vmem>>, vector<8x128xf32>
    %392 = arith.addf %391, %390 : vector<8x128xf32>
    %c0_25 = arith.constant 0 : index
    %c0_26 = arith.constant 0 : index
    %393 = vector.load %arg6[%c0_25, %c0_26] : memref<8x128xf32, #tpu.memory_space<vmem>>, vector<8x128xf32>
    tpu.vector_store %arg6[%c0_25, %c0_26], %392 {strides = array<i32>} : memref<8x128xf32, #tpu.memory_space<vmem>>, vector<8x128xf32>,
    %c0_i32_27 = arith.constant 0 : i32
    %394 = arith.cmpi eq, %arg1, %c0_i32_27 : i32
    %395 = arith.extui %394 : i1 to i32
    %c0_i32_28 = arith.constant 0 : i32
    %396 = arith.cmpi ne, %395, %c0_i32_28 : i32
    scf.if %396 {
      %c1_i32_29 = arith.constant 1 : i32
      %397 = vector.broadcast %c1_i32_29 : i32 to vector<8x1xi32>
      %398 = arith.maxsi %4, %397 : vector<8x1xi32>
      %399 = arith.sitofp %398 : vector<8x1xi32> to vector<8x1xf32>
      %c0_30 = arith.constant 0 : index
      %c0_31 = arith.constant 0 : index
      %400 = vector.load %arg6[%c0_30, %c0_31] : memref<8x128xf32, #tpu.memory_space<vmem>>, vector<8x128xf32>
      %401 = vector.broadcast %399 : vector<8x1xf32> to vector<8x128xf32>
      %402 = arith.divf %400, %401 : vector<8x128xf32>
      %c0_32 = arith.constant 0 : index
      %c0_33 = arith.constant 0 : index
      %403 = vector.load %arg5[%c0_32, %c0_33] : memref<8x128xf32, #tpu.memory_space<vmem>>, vector<8x128xf32>
      tpu.vector_store %arg5[%c0_32, %c0_33], %402 {strides = array<i32>} : memref<8x128xf32, #tpu.memory_space<vmem>>, vector<8x128xf32>,
    } else {
    }
    return
  }
  func.func @transform_0(%arg0: i32, %arg1: i32) -> (i32, i32) {
    %c0_i32 = arith.constant 0 : i32
    %c0_i32_0 = arith.constant 0 : i32
    return %arg0, %c0_i32 : i32, i32
  }
  func.func @transform_1(%arg0: i32, %arg1: i32) -> (i32, i32) {
    %c0_i32 = arith.constant 0 : i32
    %c0_i32_0 = arith.constant 0 : i32
    return %arg0, %c0_i32 : i32, i32
  }
  func.func @transform_2(%arg0: i32, %arg1: i32) -> (i32, i32) {
    %c0_i32 = arith.constant 0 : i32
    %c0_i32_0 = arith.constant 0 : i32
    return %arg1, %c0_i32 : i32, i32
  }
  func.func @transform_3(%arg0: i32, %arg1: i32) -> (i32, i32) {
    %c0_i32 = arith.constant 0 : i32
    %c0_i32_0 = arith.constant 0 : i32
    return %arg0, %c0_i32 : i32, i32
  }
}

</mosaic_0001>

<llo_original>
// kernel: tpu_custom_call.1
$region0: #{tpu_custom_call.1}
  #allocation0 [shape = 'u32[]', space=smem, size = 0x4, offset = 0x4, fixed_abs, tag = 'smem constant byte address 0x4 - core index']
  #allocation1 [shape = 'u32[144,128]{1,0:T(1,128)}', space=vmem, size = 0x12000, scoped, tag = 'internal scratch']
  #allocation2 [shape = 'f32[8,128]{1,0:T(8,128)}', space=vmem, size = 0x1000, scoped, tag = 'scratch operand']
  %s0 = inlined_call_operand.vmem [shape: s32[16,12], index: 0, kind: input, shape index: {}]
  %s1 = inlined_call_operand.vmem [shape: s32[16,1], index: 1, kind: input, shape index: {}]
  %s2 = inlined_call_operand.hbm [shape: f32[1024,128], index: 2, kind: input, shape index: {}]
  %s3 = inlined_call_operand.hbm [shape: f32[16,128], index: 3, kind: output, shape index: {}]
  %s4 = sld [smem:[#allocation0]]
  $region57: #{tpu_custom_call.1} parent=0
    _
  %s6 = ssub.s32 1, %s4
  %s7 = scalar_select 0, %s6, %s4
  $region1: #{tpu_custom_call.1} parent=0
    #allocation3 [shape = 'u8[524288]{0}', space=vmem, size = 0x80000, scoped, tag = 'input window, operand 2, single buffered']
    #allocation4 [shape = 's32[2]{0}', space=sflag, size = 0x8, scoped, tag = 'scoped memory for tpu_custom_call.1']
    #allocation5 [shape = 's32[2]{0}', space=sflag, size = 0x8, scoped, tag = 'scoped memory for tpu_custom_call.1']
    #allocation6 [shape = 'u8[8192]{0}', space=vmem, size = 0x2000, scoped, tag = 'output window, operand 0']
    %8 = vsyncpa [#allocation4], 0
    %9 = vsyncpa [#allocation5], 0
    %s10 = scalar_lea.sflag [#allocation5], 1
    %11 = vsyncpa %s10, 0
    loop: start=0, step=1, limit=4
    $region2: #{tpu_custom_call.1} parent=1 // loop_pre_header
      _
    $region3: #{tpu_custom_call.1} parent=1 // loop_header
      %s13 = sphi 0, %s17
      %p14 = scmp.ge.s32.totalorder %s13, 4
      %s20 = sphi 0, %s32
      %s21 = sphi 0, %s28
      %s22 = sphi 0, %s20
      %s23 = sphi 0, %s21
      %s24 = sphi 0, %s22
      %s25 = sphi 0, %s23
      %s35 = sphi 0, %s37
      %s38 = sphi 0, %s35
      %s39 = sphi 0, %s38
      %s55 = sphi 0, %s39
      %s61 = sphi 0, %s63
      %s64 = sphi 0, %s61
      %s65 = sphi 0, %s64
      %s81 = sphi 0, %s65
      %s87 = sphi 0, %s89
      %s90 = sphi 0, %s87
      %s91 = sphi 0, %s90
      %s107 = sphi 0, %s91
      %s113 = sphi 0, %s115
      %s116 = sphi 0, %s113
      %s117 = sphi 0, %s116
      %s133 = sphi 0, %s117
    $region4: #{tpu_custom_call.1} parent=1 // loop_header_branch
      %16 = sbr.rel (%p14) target = $region8
    $region5: #{tpu_custom_call.1} parent=1 // loop_body
      %s18 = ssub.s32 %s13, 1
      %s19 = ssub.s32 %s13, 2
      %s26 = sadd.s32 1, %s21
      %p27 = scmp.ge.s32.totalorder %s26, 1
      %s28 = scalar_select %p27, 0, %s26
      %s29 = sadd.s32 1, %s20
      %s30 = scalar_select %p27, %s29, %s20
      %p31 = scmp.ge.s32.totalorder %s30, 2
      %s32 = scalar_select %p31, 0, %s30
      %s33 = ssub.s32 %s20, %s32
      %p34 = scmp.eq.s32.totalorder %s33, 0
      %s36 = sadd.s32 %s35, 1
      %s37 = scalar_select %p34, %s35, %s36
      %p40 = pneg %p34
      %p41 = scmp.eq.s32.totalorder %s13, 1
      %p42 = por %p40, %p41
      %p43 = scmp.ne.s32.totalorder %s35, %s38
      %p44 = scmp.eq.s32.totalorder %s13, 0
      %p45 = por %p43, %p44
      %p46 = scmp.ne.s32.totalorder %s35, %s38
      %p47 = scmp.eq.s32.totalorder %s18, 1
      %p48 = por %p46, %p47
      %p49 = scmp.ne.s32.totalorder %s38, %s39
      %p50 = scmp.eq.s32.totalorder %s18, 0
      %p51 = por %p49, %p50
      %p52 = scmp.ne.s32.totalorder %s38, %s39
      %p53 = scmp.eq.s32.totalorder %s19, 1
      %p54 = por %p52, %p53
      %p56 = scmp.ne.s32.totalorder %s39, %s55
      %p57 = scmp.eq.s32.totalorder %s19, 0
      %p58 = por %p56, %p57
      %s59 = ssub.s32 %s20, %s32
      %p60 = scmp.eq.s32.totalorder %s59, 0
      %s62 = sadd.s32 %s61, 1
      %s63 = scalar_select %p60, %s61, %s62
      %p66 = pneg %p60
      %p67 = scmp.eq.s32.totalorder %s13, 1
      %p68 = por %p66, %p67
      %p69 = scmp.ne.s32.totalorder %s61, %s64
      %p70 = scmp.eq.s32.totalorder %s13, 0
      %p71 = por %p69, %p70
      %p72 = scmp.ne.s32.totalorder %s61, %s64
      %p73 = scmp.eq.s32.totalorder %s18, 1
      %p74 = por %p72, %p73
      %p75 = scmp.ne.s32.totalorder %s64, %s65
      %p76 = scmp.eq.s32.totalorder %s18, 0
      %p77 = por %p75, %p76
      %p78 = scmp.ne.s32.totalorder %s64, %s65
      %p79 = scmp.eq.s32.totalorder %s19, 1
      %p80 = por %p78, %p79
      %p82 = scmp.ne.s32.totalorder %s65, %s81
      %p83 = scmp.eq.s32.totalorder %s19, 0
      %p84 = por %p82, %p83
      %s85 = ssub.s32 %s21, %s28
      %p86 = scmp.eq.s32.totalorder %s85, 0
      %s88 = sadd.s32 %s87, 1
      %s89 = scalar_select %p86, %s87, %s88
      %p92 = pneg %p86
      %p93 = scmp.eq.s32.totalorder %s13, 1
      %p94 = por %p92, %p93
      %p95 = scmp.ne.s32.totalorder %s87, %s90
      %p96 = scmp.eq.s32.totalorder %s13, 0
      %p97 = por %p95, %p96
      %p98 = scmp.ne.s32.totalorder %s87, %s90
      %p99 = scmp.eq.s32.totalorder %s18, 1
      %p100 = por %p98, %p99
      %p101 = scmp.ne.s32.totalorder %s90, %s91
      %p102 = scmp.eq.s32.totalorder %s18, 0
      %p103 = por %p101, %p102
      %p104 = scmp.ne.s32.totalorder %s90, %s91
      %p105 = scmp.eq.s32.totalorder %s19, 1
      %p106 = por %p104, %p105
      %p108 = scmp.ne.s32.totalorder %s91, %s107
      %p109 = scmp.eq.s32.totalorder %s19, 0
      %p110 = por %p108, %p109
      %s111 = ssub.s32 %s20, %s32
      %p112 = scmp.eq.s32.totalorder %s111, 0
      %s114 = sadd.s32 %s113, 1
      %s115 = scalar_select %p112, %s113, %s114
      %p118 = pneg %p112
      %p119 = scmp.eq.s32.totalorder %s13, 1
      %p120 = por %p118, %p119
      %p121 = scmp.ne.s32.totalorder %s113, %s116
      %p122 = scmp.eq.s32.totalorder %s13, 0
      %p123 = por %p121, %p122
      %p124 = scmp.ne.s32.totalorder %s113, %s116
      %p125 = scmp.eq.s32.totalorder %s18, 1
      %p126 = por %p124, %p125
      %p127 = scmp.ne.s32.totalorder %s116, %s117
      %p128 = scmp.eq.s32.totalorder %s18, 0
      %p129 = por %p127, %p128
      %p130 = scmp.ne.s32.totalorder %s116, %s117
      %p131 = scmp.eq.s32.totalorder %s19, 1
      %p132 = por %p130, %p131
      %p134 = scmp.ne.s32.totalorder %s117, %s133
      %p135 = scmp.eq.s32.totalorder %s19, 0
      %p136 = por %p134, %p135
      %p137 = scmp.le.s32.totalorder 1, %s13
      %p138 = scmp.lt.s32.totalorder %s13, 3
      %p139 = pnand %p137, %p138
      %p140 = pneg %p139
      // Predicated region
      $region9: #{tpu_custom_call.1} parent=5 // pred_check
        _
      $region10: #{tpu_custom_call.1} parent=5 // pred_check_branch
        %142 = sbr.rel (%p139) target = $region12
      $region11: #{tpu_custom_call.1} parent=5 // pred_region
        %s143 = ssub.s32 %s13, 1
        // Predicated region
        $region13: #{tpu_custom_call.1} parent=11 // pred_check
          %p144 = pneg %p103
        $region14: #{tpu_custom_call.1} parent=11 // pred_check_branch
          %146 = sbr.rel (%p144) target = $region16
        $region15: #{tpu_custom_call.1} parent=11 // pred_region
          %s147 = smul.u32 128, %s23
          %s149 = ssub.s32 16384, 16384
          %150 = vsyncadd [#allocation4], %s149
          %s151 = smul.addr %s147, 128
          %s152 = scalar_lea.hbm %s2, %s151
          %s153 = sshll.u32 [#allocation3], 4
          %s154 = int_to_ptr.vmem [resolvable:$true] %s153
          %159 = dma.hbm_to_vmem [thread:$0]  %s152, 16384, %s154, [#allocation4], 128, 128, 8
        $region16: #{tpu_custom_call.1} parent=11 // pred_fallthru
          _
      $region12: #{tpu_custom_call.1} parent=5 // pred_fallthru
        _
      %p160 = scmp.lt.s32.totalorder %s13, 2
      // Predicated region
      $region17: #{tpu_custom_call.1} parent=5 // pred_check
        %p161 = pneg %p160
      $region18: #{tpu_custom_call.1} parent=5 // pred_check_branch
        %163 = sbr.rel (%p161) target = $region20
      $region19: #{tpu_custom_call.1} parent=5 // pred_region
        // Predicated region
        $region21: #{tpu_custom_call.1} parent=19 // pred_check
          %p164 = pneg %p45
        $region22: #{tpu_custom_call.1} parent=19 // pred_check_branch
          %166 = sbr.rel (%p164) target = $region24
        $region23: #{tpu_custom_call.1} parent=19 // pred_region
          %p167 = scmp.lt.s32.totalorder %s20, 1
          %s168 = scalar_select %p167, %s20, 1
          %s169 = smul.addr %s168, 8
          %s170 = scalar_lea.vmem %s0, %s169
        $region24: #{tpu_custom_call.1} parent=19 // pred_fallthru
          _
        // Predicated region
        $region25: #{tpu_custom_call.1} parent=19 // pred_check
          %p171 = pneg %p71
        $region26: #{tpu_custom_call.1} parent=19 // pred_check_branch
          %173 = sbr.rel (%p171) target = $region28
        $region27: #{tpu_custom_call.1} parent=19 // pred_region
          %p174 = scmp.lt.s32.totalorder %s20, 1
          %s175 = scalar_select %p174, %s20, 1
          %s176 = smul.addr %s175, 8
          %s177 = scalar_lea.vmem %s1, %s176
        $region28: #{tpu_custom_call.1} parent=19 // pred_fallthru
          _
      $region20: #{tpu_custom_call.1} parent=5 // pred_fallthru
        _
      %p178 = scmp.le.s32.totalorder 1, %s13
      %p179 = scmp.lt.s32.totalorder %s13, 3
      %p180 = pnand %p178, %p179
      %p181 = pneg %p180
      // Predicated region
      $region29: #{tpu_custom_call.1} parent=5 // pred_check
        _
      $region30: #{tpu_custom_call.1} parent=5 // pred_check_branch
        %183 = sbr.rel (%p180) target = $region32
      $region31: #{tpu_custom_call.1} parent=5 // pred_region
        %s184 = ssub.s32 %s13, 1
        // Predicated region
        $region33: #{tpu_custom_call.1} parent=31 // pred_check
          %p185 = pneg %p103
        $region34: #{tpu_custom_call.1} parent=31 // pred_check_branch
          %187 = sbr.rel (%p185) target = $region36
        $region35: #{tpu_custom_call.1} parent=31 // pred_region
          %188 = dma.done [#allocation4], 16384
        $region36: #{tpu_custom_call.1} parent=31 // pred_fallthru
          _
        %p189 = scmp.lt.s32.totalorder %s22, 1
        %s190 = scalar_select %p189, %s22, 1
        %s191 = smul.addr %s190, 8
        %s192 = scalar_lea.vmem %s0, %s191
        %p193 = pneg %p51
        %p194 = pneg %p48
        %p195 = scmp.lt.s32.totalorder %s22, 1
        %s196 = scalar_select %p195, %s22, 1
        %s197 = smul.addr %s196, 8
        %s198 = scalar_lea.vmem %s1, %s197
        %p199 = pneg %p77
        %p200 = pneg %p74
        %p201 = pneg %p103
        %p202 = pneg %p100
        %p203 = pneg %p129
        %p204 = pneg %p126
        %s205 = sand.u32 %s116, 1
        %s206 = scalar_lea.sflag [#allocation5], %s205
        %s207 = sand.u32 %s116, 1
        %s208 = smul.addr %s207, 8
        %s209 = scalar_lea.vmem [#allocation6], %s208
        %p210 = scmp.lt.s32.totalorder %s22, 1
        %s211 = scalar_select %p210, %s22, 1
        %s212 = smul.addr %s211, 8
        %s213 = scalar_lea.vmem %s0, %s212
        %p214 = scmp.lt.s32.totalorder %s22, 1
        %s215 = scalar_select %p214, %s22, 1
        %s216 = smul.addr %s215, 8
        %s217 = scalar_lea.vmem %s1, %s216
        %s218 = smul.u32 128, %s23
        %p219 = scmp.eq.s32.totalorder %s23, 0
        // Predicated region
        $region37: #{tpu_custom_call.1} parent=31 // pred_check
          %p220 = pneg %p219
        $region38: #{tpu_custom_call.1} parent=31 // pred_check_branch
          %222 = sbr.rel (%p220) target = $region40
        $region39: #{tpu_custom_call.1} parent=31 // pred_region
          %223 = vst [vmem:[#allocation2] sm:$0xff] 0.0
        $region40: #{tpu_custom_call.1} parent=31 // pred_fallthru
          _
        %v224 = vld [vmem:[%s213] sm:$0xff]
        %v225 = vld [vmem:[%s217] sm:$0xff]
        %v226 = vlaneseq
        %v227 = vand.u32 %v226, 127
        %228 = vset.pattern.permute.xlu0 0
        %229 = vperm.xlu0 %228, %v225
        %v230 = vpop.permute.xlu0 %229
        %vm231 = vcmp.lt.s32.totalorder %v227, %v230
        %v232 = vsel %vm231, %v224, 4294967295
        %s233 = smul.u32 %s23, 1024
        %v234 = vadd.s32 %v227, 128
        %v235 = vstv %s233
        %v236 = vadd.s32 %v235, %v227
        %v237 = vadd.s32 %v235, %v234
        %238 = vset.pattern.permute.xlu0 0
        %239 = vperm.xlu0 %238, %v232
        %v240 = vpop.permute.xlu0 %239
        %vm241 = vcmp.eq.s32.totalorder %v240, %v236
        %vm242 = vcmp.eq.s32.totalorder %v240, %v237
        %v243 = vsel %vm241, 1, 0
        %v244 = vsel %vm242, 1, 0
        %v245 = vcvt.s32.f32 %v243
        %v246 = vcvt.s32.f32 %v244
        %247 = vset.pattern.permute.xlu0 1
        %248 = vperm.xlu0 %247, %v232
        %v249 = vpop.permute.xlu0 %248
        %vm250 = vcmp.eq.s32.totalorder %v249, %v236
        %vm251 = vcmp.eq.s32.totalorder %v249, %v237
        %v252 = vsel %vm250, 1, 0
        %v253 = vsel %vm251, 1, 0
        %v254 = vcvt.s32.f32 %v252
        %v255 = vcvt.s32.f32 %v253
        %v256 = vadd.f32 %v245, %v254
        %v257 = vadd.f32 %v246, %v255
        %258 = vset.pattern.permute.xlu0 2
        %259 = vperm.xlu0 %258, %v232
        %v260 = vpop.permute.xlu0 %259
        %vm261 = vcmp.eq.s32.totalorder %v260, %v236
        %vm262 = vcmp.eq.s32.totalorder %v260, %v237
        %v263 = vsel %vm261, 1, 0
        %v264 = vsel %vm262, 1, 0
        %v265 = vcvt.s32.f32 %v263
        %v266 = vcvt.s32.f32 %v264
        %v267 = vadd.f32 %v256, %v265
        %v268 = vadd.f32 %v257, %v266
        %269 = vset.pattern.permute.xlu0 3
        %270 = vperm.xlu0 %269, %v232
        %v271 = vpop.permute.xlu0 %270
        %vm272 = vcmp.eq.s32.totalorder %v271, %v236
        %vm273 = vcmp.eq.s32.totalorder %v271, %v237
        %v274 = vsel %vm272, 1, 0
        %v275 = vsel %vm273, 1, 0
        %v276 = vcvt.s32.f32 %v274
        %v277 = vcvt.s32.f32 %v275
        %v278 = vadd.f32 %v267, %v276
        %v279 = vadd.f32 %v268, %v277
        %280 = vset.pattern.permute.xlu0 4
        %281 = vperm.xlu0 %280, %v232
        %v282 = vpop.permute.xlu0 %281
        %vm283 = vcmp.eq.s32.totalorder %v282, %v236
        %vm284 = vcmp.eq.s32.totalorder %v282, %v237
        %v285 = vsel %vm283, 1, 0
        %v286 = vsel %vm284, 1, 0
        %v287 = vcvt.s32.f32 %v285
        %v288 = vcvt.s32.f32 %v286
        %v289 = vadd.f32 %v278, %v287
        %v290 = vadd.f32 %v279, %v288
        %291 = vset.pattern.permute.xlu0 5
        %292 = vperm.xlu0 %291, %v232
        %v293 = vpop.permute.xlu0 %292
        %vm294 = vcmp.eq.s32.totalorder %v293, %v236
        %vm295 = vcmp.eq.s32.totalorder %v293, %v237
        %v296 = vsel %vm294, 1, 0
        %v297 = vsel %vm295, 1, 0
        %v298 = vcvt.s32.f32 %v296
        %v299 = vcvt.s32.f32 %v297
        %v300 = vadd.f32 %v289, %v298
        %v301 = vadd.f32 %v290, %v299
        %302 = vset.pattern.permute.xlu0 6
        %303 = vperm.xlu0 %302, %v232
        %v304 = vpop.permute.xlu0 %303
        %vm305 = vcmp.eq.s32.totalorder %v304, %v236
        %vm306 = vcmp.eq.s32.totalorder %v304, %v237
        %v307 = vsel %vm305, 1, 0
        %v308 = vsel %vm306, 1, 0
        %v309 = vcvt.s32.f32 %v307
        %v310 = vcvt.s32.f32 %v308
        %v311 = vadd.f32 %v300, %v309
        %v312 = vadd.f32 %v301, %v310
        %313 = vset.pattern.permute.xlu0 7
        %314 = vperm.xlu0 %313, %v232
        %v315 = vpop.permute.xlu0 %314
        %vm316 = vcmp.eq.s32.totalorder %v315, %v236
        %vm317 = vcmp.eq.s32.totalorder %v315, %v237
        %v318 = vsel %vm316, 1, 0
        %v319 = vsel %vm317, 1, 0
        %v320 = vcvt.s32.f32 %v318
        %v321 = vcvt.s32.f32 %v319
        %v322 = vadd.f32 %v311, %v320
        %v323 = vadd.f32 %v312, %v321
        %324 = vset.pattern.permute.xlu0 8
        %325 = vperm.xlu0 %324, %v232
        %v326 = vpop.permute.xlu0 %325
        %vm327 = vcmp.eq.s32.totalorder %v326, %v236
        %vm328 = vcmp.eq.s32.totalorder %v326, %v237
        %v329 = vsel %vm327, 1, 0
        %v330 = vsel %vm328, 1, 0
        %v331 = vcvt.s32.f32 %v329
        %v332 = vcvt.s32.f32 %v330
        %v333 = vadd.f32 %v322, %v331
        %v334 = vadd.f32 %v323, %v332
        %335 = vset.pattern.permute.xlu0 9
        %336 = vperm.xlu0 %335, %v232
        %v337 = vpop.permute.xlu0 %336
        %vm338 = vcmp.eq.s32.totalorder %v337, %v236
        %vm339 = vcmp.eq.s32.totalorder %v337, %v237
        %v340 = vsel %vm338, 1, 0
        %v341 = vsel %vm339, 1, 0
        %v342 = vcvt.s32.f32 %v340
        %v343 = vcvt.s32.f32 %v341
        %v344 = vadd.f32 %v333, %v342
        %v345 = vadd.f32 %v334, %v343
        %346 = vset.pattern.permute.xlu0 10
        %347 = vperm.xlu0 %346, %v232
        %v348 = vpop.permute.xlu0 %347
        %vm349 = vcmp.eq.s32.totalorder %v348, %v236
        %vm350 = vcmp.eq.s32.totalorder %v348, %v237
        %v351 = vsel %vm349, 1, 0
        %v352 = vsel %vm350, 1, 0
        %v353 = vcvt.s32.f32 %v351
        %v354 = vcvt.s32.f32 %v352
        %v355 = vadd.f32 %v344, %v353
        %v356 = vadd.f32 %v345, %v354
        %357 = vset.pattern.permute.xlu0 11
        %358 = vperm.xlu0 %357, %v232
        %v359 = vpop.permute.xlu0 %358
        %vm360 = vcmp.eq.s32.totalorder %v359, %v236
        %vm361 = vcmp.eq.s32.totalorder %v359, %v237
        %v362 = vsel %vm360, 1, 0
        %v363 = vsel %vm361, 1, 0
        %v364 = vcvt.s32.f32 %v362
        %v365 = vcvt.s32.f32 %v363
        %v366 = vadd.f32 %v355, %v364
        %v367 = vadd.f32 %v356, %v365
        %v368 = vld [vmem:[#allocation3] sm:$0xff]
        %v369 = vld [vmem:[#allocation3 + $0x8] sm:$0xff]
        %v370 = vld [vmem:[#allocation3 + $0x10] sm:$0xff]
        %v371 = vld [vmem:[#allocation3 + $0x18] sm:$0xff]
        %v372 = vld [vmem:[#allocation3 + $0x20] sm:$0xff]
        %v373 = vld [vmem:[#allocation3 + $0x28] sm:$0xff]
        %v374 = vld [vmem:[#allocation3 + $0x30] sm:$0xff]
        %v375 = vld [vmem:[#allocation3 + $0x38] sm:$0xff]
        %v376 = vld [vmem:[#allocation3 + $0x40] sm:$0xff]
        %v377 = vld [vmem:[#allocation3 + $0x48] sm:$0xff]
        %v378 = vld [vmem:[#allocation3 + $0x50] sm:$0xff]
        %v379 = vld [vmem:[#allocation3 + $0x58] sm:$0xff]
        %v380 = vld [vmem:[#allocation3 + $0x60] sm:$0xff]
        %v381 = vld [vmem:[#allocation3 + $0x68] sm:$0xff]
        %v382 = vld [vmem:[#allocation3 + $0x70] sm:$0xff]
        %v383 = vld [vmem:[#allocation3 + $0x78] sm:$0xff]
        %v384 = vld [vmem:[#allocation3 + $0x80] sm:$0xff]
        %v385 = vld [vmem:[#allocation3 + $0x88] sm:$0xff]
        %v386 = vld [vmem:[#allocation3 + $0x90] sm:$0xff]
        %v387 = vld [vmem:[#allocation3 + $0x98] sm:$0xff]
        %v388 = vld [vmem:[#allocation3 + $0xa0] sm:$0xff]
        %v389 = vld [vmem:[#allocation3 + $0xa8] sm:$0xff]
        %v390 = vld [vmem:[#allocation3 + $0xb0] sm:$0xff]
        %v391 = vld [vmem:[#allocation3 + $0xb8] sm:$0xff]
        %v392 = vld [vmem:[#allocation3 + $0xc0] sm:$0xff]
        %v393 = vld [vmem:[#allocation3 + $0xc8] sm:$0xff]
        %v394 = vld [vmem:[#allocation3 + $0xd0] sm:$0xff]
        %v395 = vld [vmem:[#allocation3 + $0xd8] sm:$0xff]
        %v396 = vld [vmem:[#allocation3 + $0xe0] sm:$0xff]
        %v397 = vld [vmem:[#allocation3 + $0xe8] sm:$0xff]
        %v398 = vld [vmem:[#allocation3 + $0xf0] sm:$0xff]
        %v399 = vld [vmem:[#allocation3 + $0xf8] sm:$0xff]
        %s400 = sadd.s32 %s233, 256
        %v401 = vstv %s400
        %v402 = vadd.s32 %v401, %v227
        %v403 = vadd.s32 %v401, %v234
        %vm404 = vcmp.eq.s32.totalorder %v240, %v402
        %vm405 = vcmp.eq.s32.totalorder %v240, %v403
        %v406 = vsel %vm404, 1, 0
        %v407 = vsel %vm405, 1, 0
        %v408 = vcvt.s32.f32 %v406
        %v409 = vcvt.s32.f32 %v407
        %vm410 = vcmp.eq.s32.totalorder %v249, %v402
        %vm411 = vcmp.eq.s32.totalorder %v249, %v403
        %v412 = vsel %vm410, 1, 0
        %v413 = vsel %vm411, 1, 0
        %v414 = vcvt.s32.f32 %v412
        %v415 = vcvt.s32.f32 %v413
        %v416 = vadd.f32 %v408, %v414
        %v417 = vadd.f32 %v409, %v415
        %vm418 = vcmp.eq.s32.totalorder %v260, %v402
        %vm419 = vcmp.eq.s32.totalorder %v260, %v403
        %v420 = vsel %vm418, 1, 0
        %v421 = vsel %vm419, 1, 0
        %v422 = vcvt.s32.f32 %v420
        %v423 = vcvt.s32.f32 %v421
        %v424 = vadd.f32 %v416, %v422
        %v425 = vadd.f32 %v417, %v423
        %vm426 = vcmp.eq.s32.totalorder %v271, %v402
        %vm427 = vcmp.eq.s32.totalorder %v271, %v403
        %v428 = vsel %vm426, 1, 0
        %v429 = vsel %vm427, 1, 0
        %v430 = vcvt.s32.f32 %v428
        %v431 = vcvt.s32.f32 %v429
        %v432 = vadd.f32 %v424, %v430
        %v433 = vadd.f32 %v425, %v431
        %vm434 = vcmp.eq.s32.totalorder %v282, %v402
        %vm435 = vcmp.eq.s32.totalorder %v282, %v403
        %v436 = vsel %vm434, 1, 0
        %v437 = vsel %vm435, 1, 0
        %v438 = vcvt.s32.f32 %v436
        %v439 = vcvt.s32.f32 %v437
        %v440 = vadd.f32 %v432, %v438
        %v441 = vadd.f32 %v433, %v439
        %vm442 = vcmp.eq.s32.totalorder %v293, %v402
        %vm443 = vcmp.eq.s32.totalorder %v293, %v403
        %v444 = vsel %vm442, 1, 0
        %v445 = vsel %vm443, 1, 0
        %v446 = vcvt.s32.f32 %v444
        %v447 = vcvt.s32.f32 %v445
        %v448 = vadd.f32 %v440, %v446
        %v449 = vadd.f32 %v441, %v447
        %vm450 = vcmp.eq.s32.totalorder %v304, %v402
        %vm451 = vcmp.eq.s32.totalorder %v304, %v403
        %v452 = vsel %vm450, 1, 0
        %v453 = vsel %vm451, 1, 0
        %v454 = vcvt.s32.f32 %v452
        %v455 = vcvt.s32.f32 %v453
        %v456 = vadd.f32 %v448, %v454
        %v457 = vadd.f32 %v449, %v455
        %vm458 = vcmp.eq.s32.totalorder %v315, %v402
        %vm459 = vcmp.eq.s32.totalorder %v315, %v403
        %v460 = vsel %vm458, 1, 0
        %v461 = vsel %vm459, 1, 0
        %v462 = vcvt.s32.f32 %v460
        %v463 = vcvt.s32.f32 %v461
        %v464 = vadd.f32 %v456, %v462
        %v465 = vadd.f32 %v457, %v463
        %vm466 = vcmp.eq.s32.totalorder %v326, %v402
        %vm467 = vcmp.eq.s32.totalorder %v326, %v403
        %v468 = vsel %vm466, 1, 0
        %v469 = vsel %vm467, 1, 0
        %v470 = vcvt.s32.f32 %v468
        %v471 = vcvt.s32.f32 %v469
        %v472 = vadd.f32 %v464, %v470
        %v473 = vadd.f32 %v465, %v471
        %vm474 = vcmp.eq.s32.totalorder %v337, %v402
        %vm475 = vcmp.eq.s32.totalorder %v337, %v403
        %v476 = vsel %vm474, 1, 0
        %v477 = vsel %vm475, 1, 0
        %v478 = vcvt.s32.f32 %v476
        %v479 = vcvt.s32.f32 %v477
        %v480 = vadd.f32 %v472, %v478
        %v481 = vadd.f32 %v473, %v479
        %vm482 = vcmp.eq.s32.totalorder %v348, %v402
        %vm483 = vcmp.eq.s32.totalorder %v348, %v403
        %v484 = vsel %vm482, 1, 0
        %v485 = vsel %vm483, 1, 0
        %v486 = vcvt.s32.f32 %v484
        %v487 = vcvt.s32.f32 %v485
        %v488 = vadd.f32 %v480, %v486
        %v489 = vadd.f32 %v481, %v487
        %vm490 = vcmp.eq.s32.totalorder %v359, %v402
        %vm491 = vcmp.eq.s32.totalorder %v359, %v403
        %v492 = vsel %vm490, 1, 0
        %v493 = vsel %vm491, 1, 0
        %v494 = vcvt.s32.f32 %v492
        %v495 = vcvt.s32.f32 %v493
        %v496 = vadd.f32 %v488, %v494
        %v497 = vadd.f32 %v489, %v495
        %s498 = scalar_lea.vmem [#allocation3], 256
        %v499 = vld [vmem:[%s498] sm:$0xff]
        %v500 = vld [vmem:[%s498 + $0x8] sm:$0xff]
        %v501 = vld [vmem:[%s498 + $0x10] sm:$0xff]
        %v502 = vld [vmem:[%s498 + $0x18] sm:$0xff]
        %v503 = vld [vmem:[%s498 + $0x20] sm:$0xff]
        %v504 = vld [vmem:[%s498 + $0x28] sm:$0xff]
        %v505 = vld [vmem:[%s498 + $0x30] sm:$0xff]
        %v506 = vld [vmem:[%s498 + $0x38] sm:$0xff]
        %v507 = vld [vmem:[%s498 + $0x40] sm:$0xff]
        %v508 = vld [vmem:[%s498 + $0x48] sm:$0xff]
        %v509 = vld [vmem:[%s498 + $0x50] sm:$0xff]
        %v510 = vld [vmem:[%s498 + $0x58] sm:$0xff]
        %v511 = vld [vmem:[%s498 + $0x60] sm:$0xff]
        %v512 = vld [vmem:[%s498 + $0x68] sm:$0xff]
        %v513 = vld [vmem:[%s498 + $0x70] sm:$0xff]
        %v514 = vld [vmem:[%s498 + $0x78] sm:$0xff]
        %v515 = vld [vmem:[%s498 + $0x80] sm:$0xff]
        %v516 = vld [vmem:[%s498 + $0x88] sm:$0xff]
        %v517 = vld [vmem:[%s498 + $0x90] sm:$0xff]
        %v518 = vld [vmem:[%s498 + $0x98] sm:$0xff]
        %v519 = vld [vmem:[%s498 + $0xa0] sm:$0xff]
        %v520 = vld [vmem:[%s498 + $0xa8] sm:$0xff]
        %v521 = vld [vmem:[%s498 + $0xb0] sm:$0xff]
        %v522 = vld [vmem:[%s498 + $0xb8] sm:$0xff]
        %v523 = vld [vmem:[%s498 + $0xc0] sm:$0xff]
        %v524 = vld [vmem:[%s498 + $0xc8] sm:$0xff]
        %v525 = vld [vmem:[%s498 + $0xd0] sm:$0xff]
        %v526 = vld [vmem:[%s498 + $0xd8] sm:$0xff]
        %v527 = vld [vmem:[%s498 + $0xe0] sm:$0xff]
        %v528 = vld [vmem:[%s498 + $0xe8] sm:$0xff]
        %v529 = vld [vmem:[%s498 + $0xf0] sm:$0xff]
        %v530 = vld [vmem:[%s498 + $0xf8] sm:$0xff]
        %531 = vmatprep.subr.mxu0 0.0
        %532 = vmatpush1.msra.mxu0 %v499
        %533 = vmatprep.subr.mxu0 0.0
        %534 = vmatpush1.msra.mxu0 %v500
        %535 = vmatprep.subr.mxu0 0.0
        %536 = vmatpush1.msra.mxu0 %v501
        %537 = vmatprep.subr.mxu0 0.0
        %538 = vmatpush1.msra.mxu0 %v502
        %539 = vmatprep.subr.mxu0 0.0
        %540 = vmatpush1.msra.mxu0 %v503
        %541 = vmatprep.subr.mxu0 0.0
        %542 = vmatpush1.msra.mxu0 %v504
        %543 = vmatprep.subr.mxu0 0.0
        %544 = vmatpush1.msra.mxu0 %v505
        %545 = vmatprep.subr.mxu0 0.0
        %546 = vmatpush1.msra.mxu0 %v506
        %547 = vmatprep.subr.mxu0 0.0
        %548 = vmatpush1.msra.mxu0 %v507
        %549 = vmatprep.subr.mxu0 0.0
        %550 = vmatpush1.msra.mxu0 %v508
        %551 = vmatprep.subr.mxu0 0.0
        %552 = vmatpush1.msra.mxu0 %v509
        %553 = vmatprep.subr.mxu0 0.0
        %554 = vmatpush1.msra.mxu0 %v510
        %555 = vmatprep.subr.mxu0 0.0
        %556 = vmatpush1.msra.mxu0 %v511
        %557 = vmatprep.subr.mxu0 0.0
        %558 = vmatpush1.msra.mxu0 %v512
        %559 = vmatprep.subr.mxu0 0.0
        %560 = vmatpush1.msra.mxu0 %v513
        %561 = vmatprep.subr.mxu0 0.0
        %562 = vmatpush1.msra.mxu0 %v514
        %563 = vmatprep.subr.mxu0 0.0
        %564 = vmatpush1.msra.mxu0 %v515
        %565 = vmatprep.subr.mxu0 0.0
        %566 = vmatpush1.msra.mxu0 %v516
        %567 = vmatprep.subr.mxu0 0.0
        %568 = vmatpush1.msra.mxu0 %v517
        %569 = vmatprep.subr.mxu0 0.0
        %570 = vmatpush1.msra.mxu0 %v518
        %571 = vmatprep.subr.mxu0 0.0
        %572 = vmatpush1.msra.mxu0 %v519
        %573 = vmatprep.subr.mxu0 0.0
        %574 = vmatpush1.msra.mxu0 %v520
        %575 = vmatprep.subr.mxu0 0.0
        %576 = vmatpush1.msra.mxu0 %v521
        %577 = vmatprep.subr.mxu0 0.0
        %578 = vmatpush1.msra.mxu0 %v522
        %579 = vmatprep.subr.mxu0 0.0
        %580 = vmatpush1.msra.mxu0 %v523
        %581 = vmatprep.subr.mxu0 0.0
        %582 = vmatpush1.msra.mxu0 %v524
        %583 = vmatprep.subr.mxu0 0.0
        %584 = vmatpush1.msra.mxu0 %v525
        %585 = vmatprep.subr.mxu0 0.0
        %586 = vmatpush1.msra.mxu0 %v526
        %587 = vmatprep.subr.mxu0 0.0
        %588 = vmatpush1.msra.mxu0 %v527
        %589 = vmatprep.subr.mxu0 0.0
        %590 = vmatpush1.msra.mxu0 %v528
        %591 = vmatprep.subr.mxu0 0.0
        %592 = vmatpush1.msra.mxu0 %v529
        %593 = vmatprep.subr.mxu0 0.0
        %594 = vmatpush1.msra.mxu0 %v530
        %595 = vmatprep.mubr.f32.mxu0 %v497
        %596 = vmatmul.mubr.f32.gmra.mrb[0].mxu0 %v496
        %v597 = vpop.f32.mrb[0].mxu0
        %v598 = vadd.f32 0.0, %v597
        %v599 = vpop.f32.mrb[0].mxu0
        %600 = vdwg.mxu0
        %601 = vmatprep.subr.mxu0 0.0
        %602 = vmatpush1.msra.mxu0 %v368
        %603 = vmatprep.subr.mxu0 0.0
        %604 = vmatpush1.msra.mxu0 %v369
        %605 = vmatprep.subr.mxu0 0.0
        %606 = vmatpush1.msra.mxu0 %v370
        %607 = vmatprep.subr.mxu0 0.0
        %608 = vmatpush1.msra.mxu0 %v371
        %609 = vmatprep.subr.mxu0 0.0
        %610 = vmatpush1.msra.mxu0 %v372
        %611 = vmatprep.subr.mxu0 0.0
        %612 = vmatpush1.msra.mxu0 %v373
        %613 = vmatprep.subr.mxu0 0.0
        %614 = vmatpush1.msra.mxu0 %v374
        %615 = vmatprep.subr.mxu0 0.0
        %616 = vmatpush1.msra.mxu0 %v375
        %617 = vmatprep.subr.mxu0 0.0
        %618 = vmatpush1.msra.mxu0 %v376
        %619 = vmatprep.subr.mxu0 0.0
        %620 = vmatpush1.msra.mxu0 %v377
        %621 = vmatprep.subr.mxu0 0.0
        %622 = vmatpush1.msra.mxu0 %v378
        %623 = vmatprep.subr.mxu0 0.0
        %624 = vmatpush1.msra.mxu0 %v379
        %625 = vmatprep.subr.mxu0 0.0
        %626 = vmatpush1.msra.mxu0 %v380
        %627 = vmatprep.subr.mxu0 0.0
        %628 = vmatpush1.msra.mxu0 %v381
        %629 = vmatprep.subr.mxu0 0.0
        %630 = vmatpush1.msra.mxu0 %v382
        %631 = vmatprep.subr.mxu0 0.0
        %632 = vmatpush1.msra.mxu0 %v383
        %633 = vmatprep.subr.mxu0 0.0
        %634 = vmatpush1.msra.mxu0 %v384
        %635 = vmatprep.subr.mxu0 0.0
        %636 = vmatpush1.msra.mxu0 %v385
        %637 = vmatprep.subr.mxu0 0.0
        %638 = vmatpush1.msra.mxu0 %v386
        %639 = vmatprep.subr.mxu0 0.0
        %640 = vmatpush1.msra.mxu0 %v387
        %641 = vmatprep.subr.mxu0 0.0
        %642 = vmatpush1.msra.mxu0 %v388
        %643 = vmatprep.subr.mxu0 0.0
        %644 = vmatpush1.msra.mxu0 %v389
        %645 = vmatprep.subr.mxu0 0.0
        %646 = vmatpush1.msra.mxu0 %v390
        %647 = vmatprep.subr.mxu0 0.0
        %648 = vmatpush1.msra.mxu0 %v391
        %649 = vmatprep.subr.mxu0 0.0
        %650 = vmatpush1.msra.mxu0 %v392
        %651 = vmatprep.subr.mxu0 0.0
        %652 = vmatpush1.msra.mxu0 %v393
        %653 = vmatprep.subr.mxu0 0.0
        %654 = vmatpush1.msra.mxu0 %v394
        %655 = vmatprep.subr.mxu0 0.0
        %656 = vmatpush1.msra.mxu0 %v395
        %657 = vmatprep.subr.mxu0 0.0
        %658 = vmatpush1.msra.mxu0 %v396
        %659 = vmatprep.subr.mxu0 0.0
        %660 = vmatpush1.msra.mxu0 %v397
        %661 = vmatprep.subr.mxu0 0.0
        %662 = vmatpush1.msra.mxu0 %v398
        %663 = vmatprep.subr.mxu0 0.0
        %664 = vmatpush1.msra.mxu0 %v399
        %665 = vmatprep.mubr.f32.mxu0 %v367
        %666 = vmatmul.mubr.f32.gmra.mrb[0].mxu0 %v366
        %v667 = vpop.f32.mrb[0].mxu0
        %v668 = vadd.f32 %v598, %v667
        %v669 = vpop.f32.mrb[0].mxu0
        %670 = vdwg.mxu0
        %s671 = sadd.s32 %s233, 512
        %v672 = vstv %s671
        %v673 = vadd.s32 %v672, %v227
        %v674 = vadd.s32 %v672, %v234
        %vm675 = vcmp.eq.s32.totalorder %v240, %v673
        %vm676 = vcmp.eq.s32.totalorder %v240, %v674
        %v677 = vsel %vm675, 1, 0
        %v678 = vsel %vm676, 1, 0
        %v679 = vcvt.s32.f32 %v677
        %v680 = vcvt.s32.f32 %v678
        %vm681 = vcmp.eq.s32.totalorder %v249, %v673
        %vm682 = vcmp.eq.s32.totalorder %v249, %v674
        %v683 = vsel %vm681, 1, 0
        %v684 = vsel %vm682, 1, 0
        %v685 = vcvt.s32.f32 %v683
        %v686 = vcvt.s32.f32 %v684
        %v687 = vadd.f32 %v679, %v685
        %v688 = vadd.f32 %v680, %v686
        %vm689 = vcmp.eq.s32.totalorder %v260, %v673
        %vm690 = vcmp.eq.s32.totalorder %v260, %v674
        %v691 = vsel %vm689, 1, 0
        %v692 = vsel %vm690, 1, 0
        %v693 = vcvt.s32.f32 %v691
        %v694 = vcvt.s32.f32 %v692
        %v695 = vadd.f32 %v687, %v693
        %v696 = vadd.f32 %v688, %v694
        %vm697 = vcmp.eq.s32.totalorder %v271, %v673
        %vm698 = vcmp.eq.s32.totalorder %v271, %v674
        %v699 = vsel %vm697, 1, 0
        %v700 = vsel %vm698, 1, 0
        %v701 = vcvt.s32.f32 %v699
        %v702 = vcvt.s32.f32 %v700
        %v703 = vadd.f32 %v695, %v701
        %v704 = vadd.f32 %v696, %v702
        %vm705 = vcmp.eq.s32.totalorder %v282, %v673
        %vm706 = vcmp.eq.s32.totalorder %v282, %v674
        %v707 = vsel %vm705, 1, 0
        %v708 = vsel %vm706, 1, 0
        %v709 = vcvt.s32.f32 %v707
        %v710 = vcvt.s32.f32 %v708
        %v711 = vadd.f32 %v703, %v709
        %v712 = vadd.f32 %v704, %v710
        %vm713 = vcmp.eq.s32.totalorder %v293, %v673
        %vm714 = vcmp.eq.s32.totalorder %v293, %v674
        %v715 = vsel %vm713, 1, 0
        %v716 = vsel %vm714, 1, 0
        %v717 = vcvt.s32.f32 %v715
        %v718 = vcvt.s32.f32 %v716
        %v719 = vadd.f32 %v711, %v717
        %v720 = vadd.f32 %v712, %v718
        %vm721 = vcmp.eq.s32.totalorder %v304, %v673
        %vm722 = vcmp.eq.s32.totalorder %v304, %v674
        %v723 = vsel %vm721, 1, 0
        %v724 = vsel %vm722, 1, 0
        %v725 = vcvt.s32.f32 %v723
        %v726 = vcvt.s32.f32 %v724
        %v727 = vadd.f32 %v719, %v725
        %v728 = vadd.f32 %v720, %v726
        %vm729 = vcmp.eq.s32.totalorder %v315, %v673
        %vm730 = vcmp.eq.s32.totalorder %v315, %v674
        %v731 = vsel %vm729, 1, 0
        %v732 = vsel %vm730, 1, 0
        %v733 = vcvt.s32.f32 %v731
        %v734 = vcvt.s32.f32 %v732
        %v735 = vadd.f32 %v727, %v733
        %v736 = vadd.f32 %v728, %v734
        %vm737 = vcmp.eq.s32.totalorder %v326, %v673
        %vm738 = vcmp.eq.s32.totalorder %v326, %v674
        %v739 = vsel %vm737, 1, 0
        %v740 = vsel %vm738, 1, 0
        %v741 = vcvt.s32.f32 %v739
        %v742 = vcvt.s32.f32 %v740
        %v743 = vadd.f32 %v735, %v741
        %v744 = vadd.f32 %v736, %v742
        %vm745 = vcmp.eq.s32.totalorder %v337, %v673
        %vm746 = vcmp.eq.s32.totalorder %v337, %v674
        %v747 = vsel %vm745, 1, 0
        %v748 = vsel %vm746, 1, 0
        %v749 = vcvt.s32.f32 %v747
        %v750 = vcvt.s32.f32 %v748
        %v751 = vadd.f32 %v743, %v749
        %v752 = vadd.f32 %v744, %v750
        %vm753 = vcmp.eq.s32.totalorder %v348, %v673
        %vm754 = vcmp.eq.s32.totalorder %v348, %v674
        %v755 = vsel %vm753, 1, 0
        %v756 = vsel %vm754, 1, 0
        %v757 = vcvt.s32.f32 %v755
        %v758 = vcvt.s32.f32 %v756
        %v759 = vadd.f32 %v751, %v757
        %v760 = vadd.f32 %v752, %v758
        %vm761 = vcmp.eq.s32.totalorder %v359, %v673
        %vm762 = vcmp.eq.s32.totalorder %v359, %v674
        %v763 = vsel %vm761, 1, 0
        %v764 = vsel %vm762, 1, 0
        %v765 = vcvt.s32.f32 %v763
        %v766 = vcvt.s32.f32 %v764
        %v767 = vadd.f32 %v759, %v765
        %v768 = vadd.f32 %v760, %v766
        %s769 = scalar_lea.vmem [#allocation3], 512
        %v770 = vld [vmem:[%s769] sm:$0xff]
        %v771 = vld [vmem:[%s769 + $0x8] sm:$0xff]
        %v772 = vld [vmem:[%s769 + $0x10] sm:$0xff]
        %v773 = vld [vmem:[%s769 + $0x18] sm:$0xff]
        %v774 = vld [vmem:[%s769 + $0x20] sm:$0xff]
        %v775 = vld [vmem:[%s769 + $0x28] sm:$0xff]
        %v776 = vld [vmem:[%s769 + $0x30] sm:$0xff]
        %v777 = vld [vmem:[%s769 + $0x38] sm:$0xff]
        %v778 = vld [vmem:[%s769 + $0x40] sm:$0xff]
        %v779 = vld [vmem:[%s769 + $0x48] sm:$0xff]
        %v780 = vld [vmem:[%s769 + $0x50] sm:$0xff]
        %v781 = vld [vmem:[%s769 + $0x58] sm:$0xff]
        %v782 = vld [vmem:[%s769 + $0x60] sm:$0xff]
        %v783 = vld [vmem:[%s769 + $0x68] sm:$0xff]
        %v784 = vld [vmem:[%s769 + $0x70] sm:$0xff]
        %v785 = vld [vmem:[%s769 + $0x78] sm:$0xff]
        %v786 = vld [vmem:[%s769 + $0x80] sm:$0xff]
        %v787 = vld [vmem:[%s769 + $0x88] sm:$0xff]
        %v788 = vld [vmem:[%s769 + $0x90] sm:$0xff]
        %v789 = vld [vmem:[%s769 + $0x98] sm:$0xff]
        %v790 = vld [vmem:[%s769 + $0xa0] sm:$0xff]
        %v791 = vld [vmem:[%s769 + $0xa8] sm:$0xff]
        %v792 = vld [vmem:[%s769 + $0xb0] sm:$0xff]
        %v793 = vld [vmem:[%s769 + $0xb8] sm:$0xff]
        %v794 = vld [vmem:[%s769 + $0xc0] sm:$0xff]
        %v795 = vld [vmem:[%s769 + $0xc8] sm:$0xff]
        %v796 = vld [vmem:[%s769 + $0xd0] sm:$0xff]
        %v797 = vld [vmem:[%s769 + $0xd8] sm:$0xff]
        %v798 = vld [vmem:[%s769 + $0xe0] sm:$0xff]
        %v799 = vld [vmem:[%s769 + $0xe8] sm:$0xff]
        %v800 = vld [vmem:[%s769 + $0xf0] sm:$0xff]
        %v801 = vld [vmem:[%s769 + $0xf8] sm:$0xff]
        %802 = vmatprep.subr.mxu0 0.0
        %803 = vmatpush1.msra.mxu0 %v770
        %804 = vmatprep.subr.mxu0 0.0
        %805 = vmatpush1.msra.mxu0 %v771
        %806 = vmatprep.subr.mxu0 0.0
        %807 = vmatpush1.msra.mxu0 %v772
        %808 = vmatprep.subr.mxu0 0.0
        %809 = vmatpush1.msra.mxu0 %v773
        %810 = vmatprep.subr.mxu0 0.0
        %811 = vmatpush1.msra.mxu0 %v774
        %812 = vmatprep.subr.mxu0 0.0
        %813 = vmatpush1.msra.mxu0 %v775
        %814 = vmatprep.subr.mxu0 0.0
        %815 = vmatpush1.msra.mxu0 %v776
        %816 = vmatprep.subr.mxu0 0.0
        %817 = vmatpush1.msra.mxu0 %v777
        %818 = vmatprep.subr.mxu0 0.0
        %819 = vmatpush1.msra.mxu0 %v778
        %820 = vmatprep.subr.mxu0 0.0
        %821 = vmatpush1.msra.mxu0 %v779
        %822 = vmatprep.subr.mxu0 0.0
        %823 = vmatpush1.msra.mxu0 %v780
        %824 = vmatprep.subr.mxu0 0.0
        %825 = vmatpush1.msra.mxu0 %v781
        %826 = vmatprep.subr.mxu0 0.0
        %827 = vmatpush1.msra.mxu0 %v782
        %828 = vmatprep.subr.mxu0 0.0
        %829 = vmatpush1.msra.mxu0 %v783
        %830 = vmatprep.subr.mxu0 0.0
        %831 = vmatpush1.msra.mxu0 %v784
        %832 = vmatprep.subr.mxu0 0.0
        %833 = vmatpush1.msra.mxu0 %v785
        %834 = vmatprep.subr.mxu0 0.0
        %835 = vmatpush1.msra.mxu0 %v786
        %836 = vmatprep.subr.mxu0 0.0
        %837 = vmatpush1.msra.mxu0 %v787
        %838 = vmatprep.subr.mxu0 0.0
        %839 = vmatpush1.msra.mxu0 %v788
        %840 = vmatprep.subr.mxu0 0.0
        %841 = vmatpush1.msra.mxu0 %v789
        %842 = vmatprep.subr.mxu0 0.0
        %843 = vmatpush1.msra.mxu0 %v790
        %844 = vmatprep.subr.mxu0 0.0
        %845 = vmatpush1.msra.mxu0 %v791
        %846 = vmatprep.subr.mxu0 0.0
        %847 = vmatpush1.msra.mxu0 %v792
        %848 = vmatprep.subr.mxu0 0.0
        %849 = vmatpush1.msra.mxu0 %v793
        %850 = vmatprep.subr.mxu0 0.0
        %851 = vmatpush1.msra.mxu0 %v794
        %852 = vmatprep.subr.mxu0 0.0
        %853 = vmatpush1.msra.mxu0 %v795
        %854 = vmatprep.subr.mxu0 0.0
        %855 = vmatpush1.msra.mxu0 %v796
        %856 = vmatprep.subr.mxu0 0.0
        %857 = vmatpush1.msra.mxu0 %v797
        %858 = vmatprep.subr.mxu0 0.0
        %859 = vmatpush1.msra.mxu0 %v798
        %860 = vmatprep.subr.mxu0 0.0
        %861 = vmatpush1.msra.mxu0 %v799
        %862 = vmatprep.subr.mxu0 0.0
        %863 = vmatpush1.msra.mxu0 %v800
        %864 = vmatprep.subr.mxu0 0.0
        %865 = vmatpush1.msra.mxu0 %v801
        %866 = vmatprep.mubr.f32.mxu0 %v768
        %867 = vmatmul.mubr.f32.gmra.mrb[0].mxu0 %v767
        %v868 = vpop.f32.mrb[0].mxu0
        %v869 = vadd.f32 0.0, %v868
        %v870 = vpop.f32.mrb[0].mxu0
        %871 = vdwg.mxu0
        %v872 = vadd.f32 %v668, %v869
        %s873 = sadd.s32 %s233, 768
        %v874 = vstv %s873
        %v875 = vadd.s32 %v874, %v227
        %v876 = vadd.s32 %v874, %v234
        %vm877 = vcmp.eq.s32.totalorder %v240, %v875
        %vm878 = vcmp.eq.s32.totalorder %v240, %v876
        %v879 = vsel %vm877, 1, 0
        %v880 = vsel %vm878, 1, 0
        %v881 = vcvt.s32.f32 %v879
        %v882 = vcvt.s32.f32 %v880
        %vm883 = vcmp.eq.s32.totalorder %v249, %v875
        %vm884 = vcmp.eq.s32.totalorder %v249, %v876
        %v885 = vsel %vm883, 1, 0
        %v886 = vsel %vm884, 1, 0
        %v887 = vcvt.s32.f32 %v885
        %v888 = vcvt.s32.f32 %v886
        %v889 = vadd.f32 %v881, %v887
        %v890 = vadd.f32 %v882, %v888
        %vm891 = vcmp.eq.s32.totalorder %v260, %v875
        %vm892 = vcmp.eq.s32.totalorder %v260, %v876
        %v893 = vsel %vm891, 1, 0
        %v894 = vsel %vm892, 1, 0
        %v895 = vcvt.s32.f32 %v893
        %v896 = vcvt.s32.f32 %v894
        %v897 = vadd.f32 %v889, %v895
        %v898 = vadd.f32 %v890, %v896
        %vm899 = vcmp.eq.s32.totalorder %v271, %v875
        %vm900 = vcmp.eq.s32.totalorder %v271, %v876
        %v901 = vsel %vm899, 1, 0
        %v902 = vsel %vm900, 1, 0
        %v903 = vcvt.s32.f32 %v901
        %v904 = vcvt.s32.f32 %v902
        %v905 = vadd.f32 %v897, %v903
        %v906 = vadd.f32 %v898, %v904
        %vm907 = vcmp.eq.s32.totalorder %v282, %v875
        %vm908 = vcmp.eq.s32.totalorder %v282, %v876
        %v909 = vsel %vm907, 1, 0
        %v910 = vsel %vm908, 1, 0
        %v911 = vcvt.s32.f32 %v909
        %v912 = vcvt.s32.f32 %v910
        %v913 = vadd.f32 %v905, %v911
        %v914 = vadd.f32 %v906, %v912
        %vm915 = vcmp.eq.s32.totalorder %v293, %v875
        %vm916 = vcmp.eq.s32.totalorder %v293, %v876
        %v917 = vsel %vm915, 1, 0
        %v918 = vsel %vm916, 1, 0
        %v919 = vcvt.s32.f32 %v917
        %v920 = vcvt.s32.f32 %v918
        %v921 = vadd.f32 %v913, %v919
        %v922 = vadd.f32 %v914, %v920
        %vm923 = vcmp.eq.s32.totalorder %v304, %v875
        %vm924 = vcmp.eq.s32.totalorder %v304, %v876
        %v925 = vsel %vm923, 1, 0
        %v926 = vsel %vm924, 1, 0
        %v927 = vcvt.s32.f32 %v925
        %v928 = vcvt.s32.f32 %v926
        %v929 = vadd.f32 %v921, %v927
        %v930 = vadd.f32 %v922, %v928
        %vm931 = vcmp.eq.s32.totalorder %v315, %v875
        %vm932 = vcmp.eq.s32.totalorder %v315, %v876
        %v933 = vsel %vm931, 1, 0
        %v934 = vsel %vm932, 1, 0
        %v935 = vcvt.s32.f32 %v933
        %v936 = vcvt.s32.f32 %v934
        %v937 = vadd.f32 %v929, %v935
        %v938 = vadd.f32 %v930, %v936
        %vm939 = vcmp.eq.s32.totalorder %v326, %v875
        %vm940 = vcmp.eq.s32.totalorder %v326, %v876
        %v941 = vsel %vm939, 1, 0
        %v942 = vsel %vm940, 1, 0
        %v943 = vcvt.s32.f32 %v941
        %v944 = vcvt.s32.f32 %v942
        %v945 = vadd.f32 %v937, %v943
        %v946 = vadd.f32 %v938, %v944
        %vm947 = vcmp.eq.s32.totalorder %v337, %v875
        %vm948 = vcmp.eq.s32.totalorder %v337, %v876
        %v949 = vsel %vm947, 1, 0
        %v950 = vsel %vm948, 1, 0
        %v951 = vcvt.s32.f32 %v949
        %v952 = vcvt.s32.f32 %v950
        %v953 = vadd.f32 %v945, %v951
        %v954 = vadd.f32 %v946, %v952
        %vm955 = vcmp.eq.s32.totalorder %v348, %v875
        %vm956 = vcmp.eq.s32.totalorder %v348, %v876
        %v957 = vsel %vm955, 1, 0
        %v958 = vsel %vm956, 1, 0
        %v959 = vcvt.s32.f32 %v957
        %v960 = vcvt.s32.f32 %v958
        %v961 = vadd.f32 %v953, %v959
        %v962 = vadd.f32 %v954, %v960
        %vm963 = vcmp.eq.s32.totalorder %v359, %v875
        %vm964 = vcmp.eq.s32.totalorder %v359, %v876
        %v965 = vsel %vm963, 1, 0
        %v966 = vsel %vm964, 1, 0
        %v967 = vcvt.s32.f32 %v965
        %v968 = vcvt.s32.f32 %v966
        %v969 = vadd.f32 %v961, %v967
        %v970 = vadd.f32 %v962, %v968
        %s971 = scalar_lea.vmem [#allocation3], 768
        %v972 = vld [vmem:[%s971] sm:$0xff]
        %v973 = vld [vmem:[%s971 + $0x8] sm:$0xff]
        %v974 = vld [vmem:[%s971 + $0x10] sm:$0xff]
        %v975 = vld [vmem:[%s971 + $0x18] sm:$0xff]
        %v976 = vld [vmem:[%s971 + $0x20] sm:$0xff]
        %v977 = vld [vmem:[%s971 + $0x28] sm:$0xff]
        %v978 = vld [vmem:[%s971 + $0x30] sm:$0xff]
        %v979 = vld [vmem:[%s971 + $0x38] sm:$0xff]
        %v980 = vld [vmem:[%s971 + $0x40] sm:$0xff]
        %v981 = vld [vmem:[%s971 + $0x48] sm:$0xff]
        %v982 = vld [vmem:[%s971 + $0x50] sm:$0xff]
        %v983 = vld [vmem:[%s971 + $0x58] sm:$0xff]
        %v984 = vld [vmem:[%s971 + $0x60] sm:$0xff]
        %v985 = vld [vmem:[%s971 + $0x68] sm:$0xff]
        %v986 = vld [vmem:[%s971 + $0x70] sm:$0xff]
        %v987 = vld [vmem:[%s971 + $0x78] sm:$0xff]
        %v988 = vld [vmem:[%s971 + $0x80] sm:$0xff]
        %v989 = vld [vmem:[%s971 + $0x88] sm:$0xff]
        %v990 = vld [vmem:[%s971 + $0x90] sm:$0xff]
        %v991 = vld [vmem:[%s971 + $0x98] sm:$0xff]
        %v992 = vld [vmem:[%s971 + $0xa0] sm:$0xff]
        %v993 = vld [vmem:[%s971 + $0xa8] sm:$0xff]
        %v994 = vld [vmem:[%s971 + $0xb0] sm:$0xff]
        %v995 = vld [vmem:[%s971 + $0xb8] sm:$0xff]
        %v996 = vld [vmem:[%s971 + $0xc0] sm:$0xff]
        %v997 = vld [vmem:[%s971 + $0xc8] sm:$0xff]
        %v998 = vld [vmem:[%s971 + $0xd0] sm:$0xff]
        %v999 = vld [vmem:[%s971 + $0xd8] sm:$0xff]
        %v1000 = vld [vmem:[%s971 + $0xe0] sm:$0xff]
        %v1001 = vld [vmem:[%s971 + $0xe8] sm:$0xff]
        %v1002 = vld [vmem:[%s971 + $0xf0] sm:$0xff]
        %v1003 = vld [vmem:[%s971 + $0xf8] sm:$0xff]
        %1004 = vmatprep.subr.mxu0 0.0
        %1005 = vmatpush1.msra.mxu0 %v972
        %1006 = vmatprep.subr.mxu0 0.0
        %1007 = vmatpush1.msra.mxu0 %v973
        %1008 = vmatprep.subr.mxu0 0.0
        %1009 = vmatpush1.msra.mxu0 %v974
        %1010 = vmatprep.subr.mxu0 0.0
        %1011 = vmatpush1.msra.mxu0 %v975
        %1012 = vmatprep.subr.mxu0 0.0
        %1013 = vmatpush1.msra.mxu0 %v976
        %1014 = vmatprep.subr.mxu0 0.0
        %1015 = vmatpush1.msra.mxu0 %v977
        %1016 = vmatprep.subr.mxu0 0.0
        %1017 = vmatpush1.msra.mxu0 %v978
        %1018 = vmatprep.subr.mxu0 0.0
        %1019 = vmatpush1.msra.mxu0 %v979
        %1020 = vmatprep.subr.mxu0 0.0
        %1021 = vmatpush1.msra.mxu0 %v980
        %1022 = vmatprep.subr.mxu0 0.0
        %1023 = vmatpush1.msra.mxu0 %v981
        %1024 = vmatprep.subr.mxu0 0.0
        %1025 = vmatpush1.msra.mxu0 %v982
        %1026 = vmatprep.subr.mxu0 0.0
        %1027 = vmatpush1.msra.mxu0 %v983
        %1028 = vmatprep.subr.mxu0 0.0
        %1029 = vmatpush1.msra.mxu0 %v984
        %1030 = vmatprep.subr.mxu0 0.0
        %1031 = vmatpush1.msra.mxu0 %v985
        %1032 = vmatprep.subr.mxu0 0.0
        %1033 = vmatpush1.msra.mxu0 %v986
        %1034 = vmatprep.subr.mxu0 0.0
        %1035 = vmatpush1.msra.mxu0 %v987
        %1036 = vmatprep.subr.mxu0 0.0
        %1037 = vmatpush1.msra.mxu0 %v988
        %1038 = vmatprep.subr.mxu0 0.0
        %1039 = vmatpush1.msra.mxu0 %v989
        %1040 = vmatprep.subr.mxu0 0.0
        %1041 = vmatpush1.msra.mxu0 %v990
        %1042 = vmatprep.subr.mxu0 0.0
        %1043 = vmatpush1.msra.mxu0 %v991
        %1044 = vmatprep.subr.mxu0 0.0
        %1045 = vmatpush1.msra.mxu0 %v992
        %1046 = vmatprep.subr.mxu0 0.0
        %1047 = vmatpush1.msra.mxu0 %v993
        %1048 = vmatprep.subr.mxu0 0.0
        %1049 = vmatpush1.msra.mxu0 %v994
        %1050 = vmatprep.subr.mxu0 0.0
        %1051 = vmatpush1.msra.mxu0 %v995
        %1052 = vmatprep.subr.mxu0 0.0
        %1053 = vmatpush1.msra.mxu0 %v996
        %1054 = vmatprep.subr.mxu0 0.0
        %1055 = vmatpush1.msra.mxu0 %v997
        %1056 = vmatprep.subr.mxu0 0.0
        %1057 = vmatpush1.msra.mxu0 %v998
        %1058 = vmatprep.subr.mxu0 0.0
        %1059 = vmatpush1.msra.mxu0 %v999
        %1060 = vmatprep.subr.mxu0 0.0
        %1061 = vmatpush1.msra.mxu0 %v1000
        %1062 = vmatprep.subr.mxu0 0.0
        %1063 = vmatpush1.msra.mxu0 %v1001
        %1064 = vmatprep.subr.mxu0 0.0
        %1065 = vmatpush1.msra.mxu0 %v1002
        %1066 = vmatprep.subr.mxu0 0.0
        %1067 = vmatpush1.msra.mxu0 %v1003
        %1068 = vmatprep.mubr.f32.mxu0 %v970
        %1069 = vmatmul.mubr.f32.gmra.mrb[0].mxu0 %v969
        %v1070 = vpop.f32.mrb[0].mxu0
        %v1071 = vadd.f32 0.0, %v1070
        %v1072 = vpop.f32.mrb[0].mxu0
        %1073 = vdwg.mxu0
        %v1074 = vadd.f32 %v872, %v1071
        %v1075 = vld [vmem:[#allocation2] sm:$0xff]
        %v1076 = vadd.f32 %v1075, %v1074
        %1077 = vst [vmem:[#allocation2] sm:$0xff] %v1076
        // Predicated region
        $region41: #{tpu_custom_call.1} parent=31 // pred_check
          %p1078 = pneg %p219
        $region42: #{tpu_custom_call.1} parent=31 // pred_check_branch
          %1080 = sbr.rel (%p1078) target = $region44
        $region43: #{tpu_custom_call.1} parent=31 // pred_region
          %vm1081 = vcmp.gt.s32.totalorder %v225, 1
          %v1082 = vsel %vm1081, %v225, 1
          %v1083 = vcvt.s32.f32 %v1082
          %v1084 = vld [vmem:[#allocation2] sm:$0xff]
          %1086 = vset.pattern.permute.xlu0 0
          %1087 = vperm.xlu0 %1086, %v1083
          %v1088 = vpop.permute.xlu0 %1087
          %v1090 = vrcp.pop %v1088
          %v1091 = vmul.f32 %v1084, %v1090
          %1092 = vst [vmem:[%s209] sm:$0xff] %v1091
        $region44: #{tpu_custom_call.1} parent=31 // pred_fallthru
          _
        %s1093 = sand.u32 %s116, 1
        %s1094 = scalar_lea.sflag [#allocation5], %s1093
        %s1095 = sand.u32 %s116, 1
        %s1096 = smul.addr %s1095, 8
        %s1097 = scalar_lea.vmem [#allocation6], %s1096
        // Predicated region
        $region45: #{tpu_custom_call.1} parent=31 // pred_check
          %p1098 = pneg %p126
        $region46: #{tpu_custom_call.1} parent=31 // pred_check_branch
          %1100 = sbr.rel (%p1098) target = $region48
        $region47: #{tpu_custom_call.1} parent=31 // pred_region
          %s1102 = ssub.s32 128, 128
          %1103 = vsyncadd %s1094, %s1102
          %s1104 = smul.addr %s22, 128
          %s1105 = scalar_lea.hbm %s3, %s1104
          %s1107 = sshll.u32 %s1097, 4
          %s1108 = int_to_ptr.vmem [resolvable:$true] %s1107
          %1110 = dma.vmem_to_hbm [thread:$0]  %s1108, 128, %s1105, %s1094
        $region48: #{tpu_custom_call.1} parent=31 // pred_fallthru
          _
      $region32: #{tpu_custom_call.1} parent=5 // pred_fallthru
        _
      %p1111 = scmp.le.s32.totalorder 2, %s13
      // Predicated region
      $region49: #{tpu_custom_call.1} parent=5 // pred_check
        %p1112 = pneg %p1111
      $region50: #{tpu_custom_call.1} parent=5 // pred_check_branch
        %1114 = sbr.rel (%p1112) target = $region52
      $region51: #{tpu_custom_call.1} parent=5 // pred_region
        %s1115 = ssub.s32 %s13, 2
        // Predicated region
        $region53: #{tpu_custom_call.1} parent=51 // pred_check
          %p1116 = pneg %p132
        $region54: #{tpu_custom_call.1} parent=51 // pred_check_branch
          %1118 = sbr.rel (%p1116) target = $region56
        $region55: #{tpu_custom_call.1} parent=51 // pred_region
          %s1119 = sand.u32 %s117, 1
          %s1120 = scalar_lea.sflag [#allocation5], %s1119
          %s1121 = sand.u32 %s117, 1
          %s1122 = smul.addr %s1121, 8
          %s1123 = scalar_lea.vmem [#allocation6], %s1122
          %1124 = dma.done %s1120, 128
        $region56: #{tpu_custom_call.1} parent=51 // pred_fallthru
          _
      $region52: #{tpu_custom_call.1} parent=5 // pred_fallthru
        _
    $region6: #{tpu_custom_call.1} parent=1 // loop_footer
      %s17 = sadd.s32 1, %s13
    $region7: #{tpu_custom_call.1} parent=1 // loop_footer_branch
      %12 = sbr.rel target = $region3
    $region8: #{tpu_custom_call.1} parent=1 // loop_exit
      _
    %1125 = vsyncpa [#allocation4], 1
    %s1126 = scalar_lea.sflag [#allocation4], 1
    %1127 = vsyncpa %s1126, 1
    %1128 = vsyncpa [#allocation5], 1
    %s1129 = scalar_lea.sflag [#allocation5], 1
    %1130 = vsyncpa %s1129, 1

</llo_original>
